<compile_context>
chip_gen: v6e
topology: v6e:2x2x1
jax: 0.10.0
libtpu: 0.0.40
codegen_flags: <defaults>
</compile_context>

<pallas_src>
import functools

import jax
import jax.numpy as jnp
from jax.experimental import pallas as pl
from jax.experimental.pallas import tpu as pltpu


def _resblock_kernel(x_ref, w1_ref, b1_ref, w2_ref, b2_ref, mask_ref, o_ref,
                     *scratch, H, W, use_im2col, precision):
    # x_ref:    (Nb, C, H*W)  Nb images; channels on sublanes, flattened
    #                         spatial on lanes (lane-dense loads/stores)
    # w*_ref:   (C, 9*C)      conv weight in im2col layout (tap-major, then ci)
    # b*_ref:   (C, 1)        bias (broadcast-added after the dot)
    # mask_ref: (3, M)        row 0: 0 where x==0 (left border of an image)
    #                         row 1: 0 where x==W-1 (right border)
    #                         row 2: 1 inside an image, 0 in separator columns
    # o_ref:    (Nb, C, H*W)
    # scratch[0] (pad_ref):   (C, L) flat feature map for ALL Nb images, laid
    #                         out [zeros(W+1)][img0][zeros(W+1)][img1]...[zeros]
    #                         so each image has its own W+1 vertical-pad strips
    # scratch[1] (patches):   (9C, M) im2col matrix (only when use_im2col)
    pad_ref = scratch[0]
    patches_ref = scratch[1] if use_im2col else None

    Nb, C, HW = x_ref.shape
    sep = W + 1                        # zero strip width (top/bottom conv pad)
    stride = HW + sep                  # per-image pitch in the packed slab
    M = Nb * HW + (Nb - 1) * sep       # packed interior width (imgs + seps)

    # Zero only the Nb+1 O(W) padding strips; image interiors are always
    # fully overwritten each step (safe under "parallel" grid semantics).
    zsep = jnp.zeros((C, sep), jnp.float32)
    for k in range(Nb + 1):
        pad_ref[:, k * stride:k * stride + sep] = zsep

    not_left = mask_ref[0:1, :]
    not_right = mask_ref[1:2, :]
    valid = mask_ref[2:3, :]

    def tap_window(t):
        # Tap (ky,kx) of the 3x3 window is the packed flat scratch shifted by
        # ky*W + kx lanes; one contiguous slice covers all Nb images at once
        # (separator columns become junk and are ignored / masked later).
        ky, kx = divmod(t, 3)
        s = ky * W + kx
        win = pad_ref[:, s:s + M]
        if kx == 0:
            win = win * not_left       # kill horizontal wraparound
        elif kx == 2:
            win = win * not_right
        return win

    dot = functools.partial(jnp.dot, preferred_element_type=jnp.float32,
                            precision=precision)

    if use_im2col:
        def conv3x3(w_ref, b_ref):
            # Single (C, 9C) @ (9C, M) MXU matmul per conv.
            for t in range(9):
                patches_ref[t * C:(t + 1) * C, :] = tap_window(t)
            return dot(w_ref[...], patches_ref[...]) + b_ref[...]
    else:
        def conv3x3(w_ref, b_ref):
            # Direct-accumulate: 9 (C,C)@(C,M) dots, no im2col scratch.
            w = w_ref[...]
            acc = dot(w[:, 0:C], tap_window(0))
            for t in range(1, 9):
                acc = acc + dot(w[:, t * C:(t + 1) * C], tap_window(t))
            return acc + b_ref[...]

    # ---- conv1 + bias + ReLU -------------------------------------------------
    for n in range(Nb):
        pad_ref[:, sep + n * stride:sep + n * stride + HW] = (
            x_ref[n].astype(jnp.float32))
    h = jnp.maximum(conv3x3(w1_ref, b1_ref), 0.0)            # (C, M)

    # ---- conv2 + bias (reuse the same packed scratch) ------------------------
    # One full-width store; `valid` zeroes the junk separator columns so they
    # act as the vertical zero-padding again.
    pad_ref[:, sep:sep + M] = h * valid
    y = conv3x3(w2_ref, b2_ref)                               # (C, M)

    # ---- residual add, per-image lane-dense stores ---------------------------
    for n in range(Nb):
        o_ref[n] = (x_ref[n].astype(jnp.float32)
                    + y[:, n * stride:n * stride + HW]).astype(o_ref.dtype)


def _pack_conv_weight(w_oihw):
    """OIHW (Cout, Cin, 3, 3) -> (Cout, 9*Cin); column order (ky*3+kx)*Cin+ci."""
    cout = w_oihw.shape[0]
    return jnp.transpose(w_oihw, (0, 2, 3, 1)).reshape(cout, -1)


def resblock_nchw(x, w1, b1, w2, b2, *, images_per_step=None, use_im2col=None,
                  precision=None):
    """x: (N, C, H, W); w*: (C, C, 3, 3) OIHW; b*: (C,). Returns (N, C, H, W).

    images_per_step: images folded into one grid step (default: whole batch —
      best on single-TC v5e/v6e; on v7x use N//2 so both TensorCores get work).
    use_im2col: single big dot via an im2col scratch (default for C < 64);
      False => 9 accumulating dots straight from the padded scratch (VMEM-lean
      path for large C / v7x).
    """
    N, C, H, W = x.shape
    HW = H * W
    if images_per_step is None:
        images_per_step = N
    Nb = images_per_step
    assert N % Nb == 0, "batch must be divisible by images_per_step"
    if use_im2col is None:
        use_im2col = C < 64

    sep = W + 1
    stride = HW + sep
    M = Nb * HW + (Nb - 1) * sep
    L = M + 2 * sep

    x_flat = x.reshape(N, C, HW)                       # free reshape
    w1m = _pack_conv_weight(w1).astype(jnp.float32)
    w2m = _pack_conv_weight(w2).astype(jnp.float32)
    b1c = b1.reshape(C, 1).astype(jnp.float32)
    b2c = b2.reshape(C, 1).astype(jnp.float32)

    # Lane masks over the packed width M (hoisted to the wrapper).
    q = jnp.arange(M, dtype=jnp.int32)
    r = q % stride
    in_img = r < HW
    xc = r % W
    masks = jnp.stack(
        [jnp.where(in_img & (xc != 0), 1.0, 0.0),
         jnp.where(in_img & (xc != W - 1), 1.0, 0.0),
         jnp.where(in_img, 1.0, 0.0)], axis=0).astype(jnp.float32)   # (3, M)

    scratch_shapes = [pltpu.VMEM((C, L), jnp.float32)]
    if use_im2col:
        scratch_shapes.append(pltpu.VMEM((9 * C, M), jnp.float32))

    # Explicit scoped-VMEM budget (v5e default is only 16 MiB).
    est_bytes = 4 * (
        2 * 2 * Nb * C * HW                         # double-buffered in/out
        + C * L                                      # flat padded scratch
        + (9 * C * M if use_im2col else C * M)       # patches / live accum
        + 2 * C * 9 * C + 2 * C + 3 * M)             # weights + biases + masks
    vmem_limit = max(32 * 1024 * 1024, min(2 * est_bytes, 128 * 1024 * 1024))

    kernel = functools.partial(_resblock_kernel, H=H, W=W,
                               use_im2col=use_im2col, precision=precision)

    y_flat = pl.pallas_call(
        kernel,
        out_shape=jax.ShapeDtypeStruct((N, C, HW), x.dtype),
        grid_spec=pltpu.PrefetchScalarGridSpec(
            num_scalar_prefetch=0,
            grid=(N // Nb,),
            in_specs=[
                pl.BlockSpec((Nb, C, HW), lambda g: (g, 0, 0)),
                pl.BlockSpec((C, 9 * C), lambda g: (0, 0)),
                pl.BlockSpec((C, 1), lambda g: (0, 0)),
                pl.BlockSpec((C, 9 * C), lambda g: (0, 0)),
                pl.BlockSpec((C, 1), lambda g: (0, 0)),
                pl.BlockSpec((3, M), lambda g: (0, 0)),
            ],
            out_specs=pl.BlockSpec((Nb, C, HW), lambda g: (g, 0, 0)),
            scratch_shapes=scratch_shapes,
        ),
        compiler_params=pltpu.CompilerParams(
            dimension_semantics=("parallel",),
            vmem_limit_bytes=vmem_limit),
    )(x_flat, w1m, b1c, w2m, b2c, masks)
    return y_flat.reshape(N, C, H, W)


def _reference_nchw(x, w1, b1, w2, b2):
    """Pure-JAX reference (matches PyTorch Conv2d, padding=1)."""
    dn = jax.lax.conv_dimension_numbers(x.shape, w1.shape,
                                        ("NCHW", "OIHW", "NCHW"))
    c1 = jax.lax.conv_general_dilated(x, w1, (1, 1), ((1, 1), (1, 1)),
                                      dimension_numbers=dn)
    c1 = c1 + b1[None, :, None, None]
    h = jnp.maximum(c1, 0.0)
    c2 = jax.lax.conv_general_dilated(h, w2, (1, 1), ((1, 1), (1, 1)),
                                      dimension_numbers=dn)
    c2 = c2 + b2[None, :, None, None]
    return x + c2


if __name__ == "__main__":
    N, C, H, W = 2, 4, 16, 16

    key = jax.random.PRNGKey(0)
    kx, kw1, kb1, kw2, kb2 = jax.random.split(key, 5)

    # Deterministic parameter init (shapes per nn.Conv2d(C, C, 3)).
    fan_in = C * 3 * 3
    bound = 1.0 / (fan_in ** 0.5)
    x = jax.random.normal(kx, (N, C, H, W), dtype=jnp.float32)
    w1 = jax.random.uniform(kw1, (C, C, 3, 3), jnp.float32, -bound, bound)
    b1 = jax.random.uniform(kb1, (C,), jnp.float32, -bound, bound)
    w2 = jax.random.uniform(kw2, (C, C, 3, 3), jnp.float32, -bound, bound)
    b2 = jax.random.uniform(kb2, (C,), jnp.float32, -bound, bound)

    y_ref = _reference_nchw(x, w1, b1, w2, b2)

    # Default path: whole batch folded into one grid step, im2col single-dot.
    y = jax.block_until_ready(resblock_nchw(x, w1, b1, w2, b2))
    assert y.shape == (N, C, H, W)
    assert jnp.allclose(y, y_ref, atol=1e-4, rtol=1e-4), "mismatch (im2col)"

    # VMEM-lean direct-accumulate path (intended for large C / v7x), exercised
    # here at the small size with 1 image per step for correctness coverage.
    y2 = jax.block_until_ready(
        resblock_nchw(x, w1, b1, w2, b2, images_per_step=1, use_im2col=False))
    assert jnp.allclose(y2, y_ref, atol=1e-4, rtol=1e-4), "mismatch (direct)"

    print("KERNEL_OK")
</pallas_src>

<mosaic_0001>
module attributes {stable_mosaic.version = 11 : i64} {
  func.func @_resblock_kernel(%arg0: i32, %arg1: memref<2x4x256xf32, #tpu.memory_space<vmem>>, %arg2: memref<4x36xf32, #tpu.memory_space<vmem>>, %arg3: memref<4x1xf32, #tpu.memory_space<vmem>>, %arg4: memref<4x36xf32, #tpu.memory_space<vmem>>, %arg5: memref<4x1xf32, #tpu.memory_space<vmem>>, %arg6: memref<3x529xf32, #tpu.memory_space<vmem>>, %arg7: memref<2x4x256xf32, #tpu.memory_space<vmem>>, %arg8: memref<4x563xf32, #tpu.memory_space<vmem>>, %arg9: memref<36x529xf32, #tpu.memory_space<vmem>>) attributes {dimension_semantics = [#tpu.dimension_semantics<parallel>], iteration_bounds = array<i64: 1>, scalar_prefetch = 0 : i64, scratch_operands = 2 : i64, tpu.core_type = #tpu.core_type<tc>, window_params = [{transform_indices = @transform_0, window_bounds = array<i64: 2, 4, 256>}, {pipeline_mode = #tpu.pipeline_mode<synchronous>, transform_indices = @transform_1, window_bounds = array<i64: 4, 36>}, {pipeline_mode = #tpu.pipeline_mode<synchronous>, transform_indices = @transform_2, window_bounds = array<i64: 4, 1>}, {pipeline_mode = #tpu.pipeline_mode<synchronous>, transform_indices = @transform_3, window_bounds = array<i64: 4, 36>}, {pipeline_mode = #tpu.pipeline_mode<synchronous>, transform_indices = @transform_4, window_bounds = array<i64: 4, 1>}, {pipeline_mode = #tpu.pipeline_mode<synchronous>, transform_indices = @transform_5, window_bounds = array<i64: 3, 529>}, {transform_indices = @transform_6, window_bounds = array<i64: 2, 4, 256>}]} {
    %cst = arith.constant 0.000000e+00 : f32
    %0 = vector.broadcast %cst : f32 to vector<4x17xf32>
    %c0 = arith.constant 0 : index
    %c0_0 = arith.constant 0 : index
    %1 = vector.load %arg8[%c0, %c0_0] : memref<4x563xf32, #tpu.memory_space<vmem>>, vector<4x17xf32>
    tpu.vector_store %arg8[%c0, %c0_0], %0 {strides = array<i32>} : memref<4x563xf32, #tpu.memory_space<vmem>>, vector<4x17xf32>,
    %c0_1 = arith.constant 0 : index
    %c273 = arith.constant 273 : index
    %2 = vector.load %arg8[%c0_1, %c273] : memref<4x563xf32, #tpu.memory_space<vmem>>, vector<4x17xf32>
    tpu.vector_store %arg8[%c0_1, %c273], %0 {strides = array<i32>} : memref<4x563xf32, #tpu.memory_space<vmem>>, vector<4x17xf32>,
    %c0_2 = arith.constant 0 : index
    %c546 = arith.constant 546 : index
    %3 = vector.load %arg8[%c0_2, %c546] : memref<4x563xf32, #tpu.memory_space<vmem>>, vector<4x17xf32>
    tpu.vector_store %arg8[%c0_2, %c546], %0 {strides = array<i32>} : memref<4x563xf32, #tpu.memory_space<vmem>>, vector<4x17xf32>,
    %c0_3 = arith.constant 0 : index
    %c0_4 = arith.constant 0 : index
    %4 = vector.load %arg6[%c0_3, %c0_4] : memref<3x529xf32, #tpu.memory_space<vmem>>, vector<1x529xf32>
    %c1 = arith.constant 1 : index
    %c0_5 = arith.constant 0 : index
    %5 = vector.load %arg6[%c1, %c0_5] : memref<3x529xf32, #tpu.memory_space<vmem>>, vector<1x529xf32>
    %c2 = arith.constant 2 : index
    %c0_6 = arith.constant 0 : index
    %6 = vector.load %arg6[%c2, %c0_6] : memref<3x529xf32, #tpu.memory_space<vmem>>, vector<1x529xf32>
    %c0_7 = arith.constant 0 : index
    %c0_8 = arith.constant 0 : index
    %c0_9 = arith.constant 0 : index
    %7 = vector.load %arg1[%c0_7, %c0_8, %c0_9] : memref<2x4x256xf32, #tpu.memory_space<vmem>>, vector<1x4x256xf32>
    %8 = vector.shape_cast %7 : vector<1x4x256xf32> to vector<4x256xf32>
    %c0_10 = arith.constant 0 : index
    %c17 = arith.constant 17 : index
    %9 = vector.load %arg8[%c0_10, %c17] : memref<4x563xf32, #tpu.memory_space<vmem>>, vector<4x256xf32>
    tpu.vector_store %arg8[%c0_10, %c17], %8 {strides = array<i32>} : memref<4x563xf32, #tpu.memory_space<vmem>>, vector<4x256xf32>,
    %c1_11 = arith.constant 1 : index
    %c0_12 = arith.constant 0 : index
    %c0_13 = arith.constant 0 : index
    %10 = vector.load %arg1[%c1_11, %c0_12, %c0_13] : memref<2x4x256xf32, #tpu.memory_space<vmem>>, vector<1x4x256xf32>
    %11 = vector.shape_cast %10 : vector<1x4x256xf32> to vector<4x256xf32>
    %c0_14 = arith.constant 0 : index
    %c290 = arith.constant 290 : index
    %12 = vector.load %arg8[%c0_14, %c290] : memref<4x563xf32, #tpu.memory_space<vmem>>, vector<4x256xf32>
    tpu.vector_store %arg8[%c0_14, %c290], %11 {strides = array<i32>} : memref<4x563xf32, #tpu.memory_space<vmem>>, vector<4x256xf32>,
    %c0_15 = arith.constant 0 : index
    %c0_16 = arith.constant 0 : index
    %13 = vector.load %arg8[%c0_15, %c0_16] : memref<4x563xf32, #tpu.memory_space<vmem>>, vector<4x529xf32>
    %14 = vector.broadcast %4 : vector<1x529xf32> to vector<4x529xf32>
    %15 = arith.mulf %13, %14 : vector<4x529xf32>
    %c0_17 = arith.constant 0 : index
    %c0_18 = arith.constant 0 : index
    %16 = vector.load %arg9[%c0_17, %c0_18] : memref<36x529xf32, #tpu.memory_space<vmem>>, vector<4x529xf32>
    tpu.vector_store %arg9[%c0_17, %c0_18], %15 {strides = array<i32>} : memref<36x529xf32, #tpu.memory_space<vmem>>, vector<4x529xf32>,
    %c0_19 = arith.constant 0 : index
    %c1_20 = arith.constant 1 : index
    %17 = vector.load %arg8[%c0_19, %c1_20] : memref<4x563xf32, #tpu.memory_space<vmem>>, vector<4x529xf32>
    %c4 = arith.constant 4 : index
    %c0_21 = arith.constant 0 : index
    %18 = vector.load %arg9[%c4, %c0_21] : memref<36x529xf32, #tpu.memory_space<vmem>>, vector<4x529xf32>
    tpu.vector_store %arg9[%c4, %c0_21], %17 {strides = array<i32>} : memref<36x529xf32, #tpu.memory_space<vmem>>, vector<4x529xf32>,
    %c0_22 = arith.constant 0 : index
    %c2_23 = arith.constant 2 : index
    %19 = vector.load %arg8[%c0_22, %c2_23] : memref<4x563xf32, #tpu.memory_space<vmem>>, vector<4x529xf32>
    %20 = vector.broadcast %5 : vector<1x529xf32> to vector<4x529xf32>
    %21 = arith.mulf %19, %20 : vector<4x529xf32>
    %c8 = arith.constant 8 : index
    %c0_24 = arith.constant 0 : index
    %22 = vector.load %arg9[%c8, %c0_24] : memref<36x529xf32, #tpu.memory_space<vmem>>, vector<4x529xf32>
    tpu.vector_store %arg9[%c8, %c0_24], %21 {strides = array<i32>} : memref<36x529xf32, #tpu.memory_space<vmem>>, vector<4x529xf32>,
    %c0_25 = arith.constant 0 : index
    %c16 = arith.constant 16 : index
    %23 = vector.load %arg8[%c0_25, %c16] : memref<4x563xf32, #tpu.memory_space<vmem>>, vector<4x529xf32>
    %24 = vector.broadcast %4 : vector<1x529xf32> to vector<4x529xf32>
    %25 = arith.mulf %23, %24 : vector<4x529xf32>
    %c12 = arith.constant 12 : index
    %c0_26 = arith.constant 0 : index
    %26 = vector.load %arg9[%c12, %c0_26] : memref<36x529xf32, #tpu.memory_space<vmem>>, vector<4x529xf32>
    tpu.vector_store %arg9[%c12, %c0_26], %25 {strides = array<i32>} : memref<36x529xf32, #tpu.memory_space<vmem>>, vector<4x529xf32>,
    %c0_27 = arith.constant 0 : index
    %c17_28 = arith.constant 17 : index
    %27 = vector.load %arg8[%c0_27, %c17_28] : memref<4x563xf32, #tpu.memory_space<vmem>>, vector<4x529xf32>
    %c16_29 = arith.constant 16 : index
    %c0_30 = arith.constant 0 : index
    %28 = vector.load %arg9[%c16_29, %c0_30] : memref<36x529xf32, #tpu.memory_space<vmem>>, vector<4x529xf32>
    tpu.vector_store %arg9[%c16_29, %c0_30], %27 {strides = array<i32>} : memref<36x529xf32, #tpu.memory_space<vmem>>, vector<4x529xf32>,
    %c0_31 = arith.constant 0 : index
    %c18 = arith.constant 18 : index
    %29 = vector.load %arg8[%c0_31, %c18] : memref<4x563xf32, #tpu.memory_space<vmem>>, vector<4x529xf32>
    %30 = vector.broadcast %5 : vector<1x529xf32> to vector<4x529xf32>
    %31 = arith.mulf %29, %30 : vector<4x529xf32>
    %c20 = arith.constant 20 : index
    %c0_32 = arith.constant 0 : index
    %32 = vector.load %arg9[%c20, %c0_32] : memref<36x529xf32, #tpu.memory_space<vmem>>, vector<4x529xf32>
    tpu.vector_store %arg9[%c20, %c0_32], %31 {strides = array<i32>} : memref<36x529xf32, #tpu.memory_space<vmem>>, vector<4x529xf32>,
    %c0_33 = arith.constant 0 : index
    %c32 = arith.constant 32 : index
    %33 = vector.load %arg8[%c0_33, %c32] : memref<4x563xf32, #tpu.memory_space<vmem>>, vector<4x529xf32>
    %34 = vector.broadcast %4 : vector<1x529xf32> to vector<4x529xf32>
    %35 = arith.mulf %33, %34 : vector<4x529xf32>
    %c24 = arith.constant 24 : index
    %c0_34 = arith.constant 0 : index
    %36 = vector.load %arg9[%c24, %c0_34] : memref<36x529xf32, #tpu.memory_space<vmem>>, vector<4x529xf32>
    tpu.vector_store %arg9[%c24, %c0_34], %35 {strides = array<i32>} : memref<36x529xf32, #tpu.memory_space<vmem>>, vector<4x529xf32>,
    %c0_35 = arith.constant 0 : index
    %c33 = arith.constant 33 : index
    %37 = vector.load %arg8[%c0_35, %c33] : memref<4x563xf32, #tpu.memory_space<vmem>>, vector<4x529xf32>
    %c28 = arith.constant 28 : index
    %c0_36 = arith.constant 0 : index
    %38 = vector.load %arg9[%c28, %c0_36] : memref<36x529xf32, #tpu.memory_space<vmem>>, vector<4x529xf32>
    tpu.vector_store %arg9[%c28, %c0_36], %37 {strides = array<i32>} : memref<36x529xf32, #tpu.memory_space<vmem>>, vector<4x529xf32>,
    %c0_37 = arith.constant 0 : index
    %c34 = arith.constant 34 : index
    %39 = vector.load %arg8[%c0_37, %c34] : memref<4x563xf32, #tpu.memory_space<vmem>>, vector<4x529xf32>
    %40 = vector.broadcast %5 : vector<1x529xf32> to vector<4x529xf32>
    %41 = arith.mulf %39, %40 : vector<4x529xf32>
    %c32_38 = arith.constant 32 : index
    %c0_39 = arith.constant 0 : index
    %42 = vector.load %arg9[%c32_38, %c0_39] : memref<36x529xf32, #tpu.memory_space<vmem>>, vector<4x529xf32>
    tpu.vector_store %arg9[%c32_38, %c0_39], %41 {strides = array<i32>} : memref<36x529xf32, #tpu.memory_space<vmem>>, vector<4x529xf32>,
    %c0_40 = arith.constant 0 : index
    %c0_41 = arith.constant 0 : index
    %43 = vector.load %arg2[%c0_40, %c0_41] : memref<4x36xf32, #tpu.memory_space<vmem>>, vector<4x36xf32>
    %c0_42 = arith.constant 0 : index
    %c0_43 = arith.constant 0 : index
    %44 = vector.load %arg9[%c0_42, %c0_43] : memref<36x529xf32, #tpu.memory_space<vmem>>, vector<36x529xf32>
    %cst_44 = arith.constant dense<0.000000e+00> : vector<4x529xf32>
    %45 = tpu.matmul %43, %44, %cst_44 {dimension_numbers = #tpu.dot_dimension_numbers<[1], [0], [0], [1], [0, 0, 1, 1], [], []>} : vector<4x36xf32>, vector<36x529xf32>, vector<4x529xf32> -> vector<4x529xf32>
    %c0_45 = arith.constant 0 : index
    %c0_46 = arith.constant 0 : index
    %46 = vector.load %arg3[%c0_45, %c0_46] : memref<4x1xf32, #tpu.memory_space<vmem>>, vector<4x1xf32>
    %47 = vector.broadcast %46 : vector<4x1xf32> to vector<4x529xf32>
    %48 = arith.addf %45, %47 : vector<4x529xf32>
    %cst_47 = arith.constant 0.000000e+00 : f32
    %49 = vector.broadcast %cst_47 : f32 to vector<4x529xf32>
    %50 = arith.maximumf %48, %49 : vector<4x529xf32>
    %51 = vector.broadcast %6 : vector<1x529xf32> to vector<4x529xf32>
    %52 = arith.mulf %50, %51 : vector<4x529xf32>
    %c0_48 = arith.constant 0 : index
    %c17_49 = arith.constant 17 : index
    %53 = vector.load %arg8[%c0_48, %c17_49] : memref<4x563xf32, #tpu.memory_space<vmem>>, vector<4x529xf32>
    tpu.vector_store %arg8[%c0_48, %c17_49], %52 {strides = array<i32>} : memref<4x563xf32, #tpu.memory_space<vmem>>, vector<4x529xf32>,
    %c0_50 = arith.constant 0 : index
    %c0_51 = arith.constant 0 : index
    %54 = vector.load %arg8[%c0_50, %c0_51] : memref<4x563xf32, #tpu.memory_space<vmem>>, vector<4x529xf32>
    %55 = vector.broadcast %4 : vector<1x529xf32> to vector<4x529xf32>
    %56 = arith.mulf %54, %55 : vector<4x529xf32>
    %c0_52 = arith.constant 0 : index
    %c0_53 = arith.constant 0 : index
    %57 = vector.load %arg9[%c0_52, %c0_53] : memref<36x529xf32, #tpu.memory_space<vmem>>, vector<4x529xf32>
    tpu.vector_store %arg9[%c0_52, %c0_53], %56 {strides = array<i32>} : memref<36x529xf32, #tpu.memory_space<vmem>>, vector<4x529xf32>,
    %c0_54 = arith.constant 0 : index
    %c1_55 = arith.constant 1 : index
    %58 = vector.load %arg8[%c0_54, %c1_55] : memref<4x563xf32, #tpu.memory_space<vmem>>, vector<4x529xf32>
    %c4_56 = arith.constant 4 : index
    %c0_57 = arith.constant 0 : index
    %59 = vector.load %arg9[%c4_56, %c0_57] : memref<36x529xf32, #tpu.memory_space<vmem>>, vector<4x529xf32>
    tpu.vector_store %arg9[%c4_56, %c0_57], %58 {strides = array<i32>} : memref<36x529xf32, #tpu.memory_space<vmem>>, vector<4x529xf32>,
    %c0_58 = arith.constant 0 : index
    %c2_59 = arith.constant 2 : index
    %60 = vector.load %arg8[%c0_58, %c2_59] : memref<4x563xf32, #tpu.memory_space<vmem>>, vector<4x529xf32>
    %61 = vector.broadcast %5 : vector<1x529xf32> to vector<4x529xf32>
    %62 = arith.mulf %60, %61 : vector<4x529xf32>
    %c8_60 = arith.constant 8 : index
    %c0_61 = arith.constant 0 : index
    %63 = vector.load %arg9[%c8_60, %c0_61] : memref<36x529xf32, #tpu.memory_space<vmem>>, vector<4x529xf32>
    tpu.vector_store %arg9[%c8_60, %c0_61], %62 {strides = array<i32>} : memref<36x529xf32, #tpu.memory_space<vmem>>, vector<4x529xf32>,
    %c0_62 = arith.constant 0 : index
    %c16_63 = arith.constant 16 : index
    %64 = vector.load %arg8[%c0_62, %c16_63] : memref<4x563xf32, #tpu.memory_space<vmem>>, vector<4x529xf32>
    %65 = vector.broadcast %4 : vector<1x529xf32> to vector<4x529xf32>
    %66 = arith.mulf %64, %65 : vector<4x529xf32>
    %c12_64 = arith.constant 12 : index
    %c0_65 = arith.constant 0 : index
    %67 = vector.load %arg9[%c12_64, %c0_65] : memref<36x529xf32, #tpu.memory_space<vmem>>, vector<4x529xf32>
    tpu.vector_store %arg9[%c12_64, %c0_65], %66 {strides = array<i32>} : memref<36x529xf32, #tpu.memory_space<vmem>>, vector<4x529xf32>,
    %c0_66 = arith.constant 0 : index
    %c17_67 = arith.constant 17 : index
    %68 = vector.load %arg8[%c0_66, %c17_67] : memref<4x563xf32, #tpu.memory_space<vmem>>, vector<4x529xf32>
    %c16_68 = arith.constant 16 : index
    %c0_69 = arith.constant 0 : index
    %69 = vector.load %arg9[%c16_68, %c0_69] : memref<36x529xf32, #tpu.memory_space<vmem>>, vector<4x529xf32>
    tpu.vector_store %arg9[%c16_68, %c0_69], %68 {strides = array<i32>} : memref<36x529xf32, #tpu.memory_space<vmem>>, vector<4x529xf32>,
    %c0_70 = arith.constant 0 : index
    %c18_71 = arith.constant 18 : index
    %70 = vector.load %arg8[%c0_70, %c18_71] : memref<4x563xf32, #tpu.memory_space<vmem>>, vector<4x529xf32>
    %71 = vector.broadcast %5 : vector<1x529xf32> to vector<4x529xf32>
    %72 = arith.mulf %70, %71 : vector<4x529xf32>
    %c20_72 = arith.constant 20 : index
    %c0_73 = arith.constant 0 : index
    %73 = vector.load %arg9[%c20_72, %c0_73] : memref<36x529xf32, #tpu.memory_space<vmem>>, vector<4x529xf32>
    tpu.vector_store %arg9[%c20_72, %c0_73], %72 {strides = array<i32>} : memref<36x529xf32, #tpu.memory_space<vmem>>, vector<4x529xf32>,
    %c0_74 = arith.constant 0 : index
    %c32_75 = arith.constant 32 : index
    %74 = vector.load %arg8[%c0_74, %c32_75] : memref<4x563xf32, #tpu.memory_space<vmem>>, vector<4x529xf32>
    %75 = vector.broadcast %4 : vector<1x529xf32> to vector<4x529xf32>
    %76 = arith.mulf %74, %75 : vector<4x529xf32>
    %c24_76 = arith.constant 24 : index
    %c0_77 = arith.constant 0 : index
    %77 = vector.load %arg9[%c24_76, %c0_77] : memref<36x529xf32, #tpu.memory_space<vmem>>, vector<4x529xf32>
    tpu.vector_store %arg9[%c24_76, %c0_77], %76 {strides = array<i32>} : memref<36x529xf32, #tpu.memory_space<vmem>>, vector<4x529xf32>,
    %c0_78 = arith.constant 0 : index
    %c33_79 = arith.constant 33 : index
    %78 = vector.load %arg8[%c0_78, %c33_79] : memref<4x563xf32, #tpu.memory_space<vmem>>, vector<4x529xf32>
    %c28_80 = arith.constant 28 : index
    %c0_81 = arith.constant 0 : index
    %79 = vector.load %arg9[%c28_80, %c0_81] : memref<36x529xf32, #tpu.memory_space<vmem>>, vector<4x529xf32>
    tpu.vector_store %arg9[%c28_80, %c0_81], %78 {strides = array<i32>} : memref<36x529xf32, #tpu.memory_space<vmem>>, vector<4x529xf32>,
    %c0_82 = arith.constant 0 : index
    %c34_83 = arith.constant 34 : index
    %80 = vector.load %arg8[%c0_82, %c34_83] : memref<4x563xf32, #tpu.memory_space<vmem>>, vector<4x529xf32>
    %81 = vector.broadcast %5 : vector<1x529xf32> to vector<4x529xf32>
    %82 = arith.mulf %80, %81 : vector<4x529xf32>
    %c32_84 = arith.constant 32 : index
    %c0_85 = arith.constant 0 : index
    %83 = vector.load %arg9[%c32_84, %c0_85] : memref<36x529xf32, #tpu.memory_space<vmem>>, vector<4x529xf32>
    tpu.vector_store %arg9[%c32_84, %c0_85], %82 {strides = array<i32>} : memref<36x529xf32, #tpu.memory_space<vmem>>, vector<4x529xf32>,
    %c0_86 = arith.constant 0 : index
    %c0_87 = arith.constant 0 : index
    %84 = vector.load %arg4[%c0_86, %c0_87] : memref<4x36xf32, #tpu.memory_space<vmem>>, vector<4x36xf32>
    %c0_88 = arith.constant 0 : index
    %c0_89 = arith.constant 0 : index
    %85 = vector.load %arg9[%c0_88, %c0_89] : memref<36x529xf32, #tpu.memory_space<vmem>>, vector<36x529xf32>
    %cst_90 = arith.constant dense<0.000000e+00> : vector<4x529xf32>
    %86 = tpu.matmul %84, %85, %cst_90 {dimension_numbers = #tpu.dot_dimension_numbers<[1], [0], [0], [1], [0, 0, 1, 1], [], []>} : vector<4x36xf32>, vector<36x529xf32>, vector<4x529xf32> -> vector<4x529xf32>
    %c0_91 = arith.constant 0 : index
    %c0_92 = arith.constant 0 : index
    %87 = vector.load %arg5[%c0_91, %c0_92] : memref<4x1xf32, #tpu.memory_space<vmem>>, vector<4x1xf32>
    %88 = vector.broadcast %87 : vector<4x1xf32> to vector<4x529xf32>
    %89 = arith.addf %86, %88 : vector<4x529xf32>
    %c0_93 = arith.constant 0 : index
    %c0_94 = arith.constant 0 : index
    %c0_95 = arith.constant 0 : index
    %90 = vector.load %arg1[%c0_93, %c0_94, %c0_95] : memref<2x4x256xf32, #tpu.memory_space<vmem>>, vector<1x4x256xf32>
    %91 = vector.shape_cast %90 : vector<1x4x256xf32> to vector<4x256xf32>
    %92 = vector.extract_strided_slice %89 {offsets = [0, 0], sizes = [4, 256], strides = [1, 1]} : vector<4x529xf32> to vector<4x256xf32>
    %93 = arith.addf %91, %92 : vector<4x256xf32>
    %c0_96 = arith.constant 0 : index
    %c0_97 = arith.constant 0 : index
    %c0_98 = arith.constant 0 : index
    %94 = vector.load %arg7[%c0_96, %c0_97, %c0_98] : memref<2x4x256xf32, #tpu.memory_space<vmem>>, vector<1x4x256xf32>
    %95 = vector.shape_cast %94 : vector<1x4x256xf32> to vector<4x256xf32>
    %96 = vector.shape_cast %93 : vector<4x256xf32> to vector<1x4x256xf32>
    tpu.vector_store %arg7[%c0_96, %c0_97, %c0_98], %96 {strides = array<i32>} : memref<2x4x256xf32, #tpu.memory_space<vmem>>, vector<1x4x256xf32>,
    %c1_99 = arith.constant 1 : index
    %c0_100 = arith.constant 0 : index
    %c0_101 = arith.constant 0 : index
    %97 = vector.load %arg1[%c1_99, %c0_100, %c0_101] : memref<2x4x256xf32, #tpu.memory_space<vmem>>, vector<1x4x256xf32>
    %98 = vector.shape_cast %97 : vector<1x4x256xf32> to vector<4x256xf32>
    %99 = vector.extract_strided_slice %89 {offsets = [0, 273], sizes = [4, 256], strides = [1, 1]} : vector<4x529xf32> to vector<4x256xf32>
    %100 = arith.addf %98, %99 : vector<4x256xf32>
    %c1_102 = arith.constant 1 : index
    %c0_103 = arith.constant 0 : index
    %c0_104 = arith.constant 0 : index
    %101 = vector.load %arg7[%c1_102, %c0_103, %c0_104] : memref<2x4x256xf32, #tpu.memory_space<vmem>>, vector<1x4x256xf32>
    %102 = vector.shape_cast %101 : vector<1x4x256xf32> to vector<4x256xf32>
    %103 = vector.shape_cast %100 : vector<4x256xf32> to vector<1x4x256xf32>
    tpu.vector_store %arg7[%c1_102, %c0_103, %c0_104], %103 {strides = array<i32>} : memref<2x4x256xf32, #tpu.memory_space<vmem>>, vector<1x4x256xf32>,
    return
  }
  func.func @transform_0(%arg0: i32) -> (i32, i32, i32) {
    %c0_i32 = arith.constant 0 : i32
    %c0_i32_0 = arith.constant 0 : i32
    %c0_i32_1 = arith.constant 0 : i32
    return %arg0, %c0_i32, %c0_i32_0 : i32, i32, i32
  }
  func.func @transform_1(%arg0: i32) -> (i32, i32) {
    %c0_i32 = arith.constant 0 : i32
    %c0_i32_0 = arith.constant 0 : i32
    %c0_i32_1 = arith.constant 0 : i32
    return %c0_i32, %c0_i32_0 : i32, i32
  }
  func.func @transform_2(%arg0: i32) -> (i32, i32) {
    %c0_i32 = arith.constant 0 : i32
    %c0_i32_0 = arith.constant 0 : i32
    %c0_i32_1 = arith.constant 0 : i32
    return %c0_i32, %c0_i32_0 : i32, i32
  }
  func.func @transform_3(%arg0: i32) -> (i32, i32) {
    %c0_i32 = arith.constant 0 : i32
    %c0_i32_0 = arith.constant 0 : i32
    %c0_i32_1 = arith.constant 0 : i32
    return %c0_i32, %c0_i32_0 : i32, i32
  }
  func.func @transform_4(%arg0: i32) -> (i32, i32) {
    %c0_i32 = arith.constant 0 : i32
    %c0_i32_0 = arith.constant 0 : i32
    %c0_i32_1 = arith.constant 0 : i32
    return %c0_i32, %c0_i32_0 : i32, i32
  }
  func.func @transform_5(%arg0: i32) -> (i32, i32) {
    %c0_i32 = arith.constant 0 : i32
    %c0_i32_0 = arith.constant 0 : i32
    %c0_i32_1 = arith.constant 0 : i32
    return %c0_i32, %c0_i32_0 : i32, i32
  }
  func.func @transform_6(%arg0: i32) -> (i32, i32, i32) {
    %c0_i32 = arith.constant 0 : i32
    %c0_i32_0 = arith.constant 0 : i32
    %c0_i32_1 = arith.constant 0 : i32
    return %arg0, %c0_i32, %c0_i32_0 : i32, i32, i32
  }
}

</mosaic_0001>

<llo_original>
// kernel: tpu_custom_call.1
$region0: #{tpu_custom_call.1}
  #allocation0 [shape = 'u32[]', space=smem, size = 0x4, offset = 0x4, fixed_abs, tag = 'smem constant byte address 0x4 - core index']
  #allocation1 [shape = 'u32[144,128]{1,0:T(1,128)}', space=vmem, size = 0x12000, scoped, tag = 'internal scratch']
  #allocation2 [shape = 'f32[4,563]{1,0:T(4,128)}', space=vmem, size = 0x2800, scoped, tag = 'scratch operand']
  #allocation3 [shape = 'f32[36,529]{1,0:T(8,128)}', space=vmem, size = 0x19000, scoped, tag = 'scratch operand']
  %s0 = inlined_call_operand.hbm [shape: f32[2,4,256], index: 0, kind: input, shape index: {}]
  %s1 = inlined_call_operand.vmem [shape: f32[4,36], index: 1, kind: input, shape index: {}]
  %s2 = inlined_call_operand.vmem [shape: f32[4,1], index: 2, kind: input, shape index: {}]
  %s3 = inlined_call_operand.vmem [shape: f32[4,36], index: 3, kind: input, shape index: {}]
  %s4 = inlined_call_operand.vmem [shape: f32[4,1], index: 4, kind: input, shape index: {}]
  %s5 = inlined_call_operand.hbm [shape: f32[3,529], index: 5, kind: input, shape index: {}]
  %s6 = inlined_call_operand.hbm [shape: f32[2,4,256], index: 6, kind: output, shape index: {}]
  %s7 = sld [smem:[#allocation0]]
  $region42: #{tpu_custom_call.1} parent=0
    _
  %s9 = ssub.s32 1, %s7
  %s10 = scalar_select 0, %s9, %s7
  $region1: #{tpu_custom_call.1} parent=0
    #allocation4 [shape = 'u8[8192]{0}', space=vmem, size = 0x2000, scoped, tag = 'input window, operand 0, single buffered']
    #allocation5 [shape = 's32[1]{0}', space=sflag, size = 0x4, scoped, tag = 'scoped memory for tpu_custom_call.1']
    #allocation6 [shape = 's32[1]{0}', space=sflag, size = 0x4, scoped, tag = 'scoped memory for tpu_custom_call.1']
    #allocation7 [shape = 'u8[10240]{0}', space=vmem, size = 0x2800, scoped, tag = 'input window, operand 5, single buffered']
    #allocation8 [shape = 's32[1]{0}', space=sflag, size = 0x4, scoped, tag = 'scoped memory for tpu_custom_call.1']
    #allocation9 [shape = 'u8[8192]{0}', space=vmem, size = 0x2000, scoped, tag = 'output window, operand 0, single buffered']
    %11 = vsyncpa [#allocation5], 0
    %12 = vsyncpa [#allocation8], 0
    %13 = vsyncpa [#allocation6], 0
    // Predicated region
    $region2: #{tpu_custom_call.1} parent=1 // pred_check
      _
    $region3: #{tpu_custom_call.1} parent=1 // pred_check_branch
      %15 = sbr.rel (0) target = $region5
    $region4: #{tpu_custom_call.1} parent=1 // pred_region
      %s17 = ssub.s32 256, 256
      %18 = vsyncadd [#allocation5], %s17
      %s19 = sshll.u32 [#allocation4], 4
      %s20 = int_to_ptr.vmem [resolvable:$true] %s19
      %25 = dma.hbm_to_vmem [thread:$0]  %s0, 256, %s20, [#allocation5], 128, 128, 8
    $region5: #{tpu_custom_call.1} parent=1 // pred_fallthru
      _
    // Predicated region
    $region6: #{tpu_custom_call.1} parent=1 // pred_check
      _
    $region7: #{tpu_custom_call.1} parent=1 // pred_check_branch
      %27 = sbr.rel (0) target = $region9
    $region8: #{tpu_custom_call.1} parent=1 // pred_region
      _
    $region9: #{tpu_custom_call.1} parent=1 // pred_fallthru
      _
    // Predicated region
    $region10: #{tpu_custom_call.1} parent=1 // pred_check
      _
    $region11: #{tpu_custom_call.1} parent=1 // pred_check_branch
      %29 = sbr.rel (0) target = $region13
    $region12: #{tpu_custom_call.1} parent=1 // pred_region
      _
    $region13: #{tpu_custom_call.1} parent=1 // pred_fallthru
      _
    // Predicated region
    $region14: #{tpu_custom_call.1} parent=1 // pred_check
      _
    $region15: #{tpu_custom_call.1} parent=1 // pred_check_branch
      %31 = sbr.rel (0) target = $region17
    $region16: #{tpu_custom_call.1} parent=1 // pred_region
      _
    $region17: #{tpu_custom_call.1} parent=1 // pred_fallthru
      _
    // Predicated region
    $region18: #{tpu_custom_call.1} parent=1 // pred_check
      _
    $region19: #{tpu_custom_call.1} parent=1 // pred_check_branch
      %33 = sbr.rel (0) target = $region21
    $region20: #{tpu_custom_call.1} parent=1 // pred_region
      _
    $region21: #{tpu_custom_call.1} parent=1 // pred_fallthru
      _
    // Predicated region
    $region22: #{tpu_custom_call.1} parent=1 // pred_check
      _
    $region23: #{tpu_custom_call.1} parent=1 // pred_check_branch
      %35 = sbr.rel (0) target = $region25
    $region24: #{tpu_custom_call.1} parent=1 // pred_region
      %s37 = ssub.s32 320, 320
      %38 = vsyncadd [#allocation8], %s37
      %s40 = sshll.u32 [#allocation7], 4
      %s41 = int_to_ptr.vmem [resolvable:$true] %s40
      %43 = dma.hbm_to_vmem [thread:$0]  %s5, 320, %s41, [#allocation8]
    $region25: #{tpu_custom_call.1} parent=1 // pred_fallthru
      _
    // Predicated region
    $region26: #{tpu_custom_call.1} parent=1 // pred_check
      _
    $region27: #{tpu_custom_call.1} parent=1 // pred_check_branch
      %45 = sbr.rel (0) target = $region29
    $region28: #{tpu_custom_call.1} parent=1 // pred_region
      %46 = dma.done [#allocation5], 256
    $region29: #{tpu_custom_call.1} parent=1 // pred_fallthru
      _
    // Predicated region
    $region30: #{tpu_custom_call.1} parent=1 // pred_check
      _
    $region31: #{tpu_custom_call.1} parent=1 // pred_check_branch
      %48 = sbr.rel (0) target = $region33
    $region32: #{tpu_custom_call.1} parent=1 // pred_region
      %49 = dma.done [#allocation8], 320
    $region33: #{tpu_custom_call.1} parent=1 // pred_fallthru
      _
    %vm50 = vcmask 134144
    %51 = vst.msk [vmem:[#allocation2] sm:$0xf] %vm50, 0.0
    %vm52 = vcmask 273544
    %53 = vst.msk [vmem:[#allocation2 + $0x8] sm:$0xf] %vm52, 0.0
    %vm54 = vcmask 412944
    %55 = vst.msk [vmem:[#allocation2 + $0x10] sm:$0xf] %vm54, 0.0
    %v56 = vld [vmem:[#allocation7] ss:$4 sm:$0x1f]
    %s57 = scalar_lea.vmem [#allocation7], 1
    %v58 = vld [vmem:[%s57] ss:$4 sm:$0x1f]
    %s59 = scalar_lea.vmem [#allocation7], 2
    %v60 = vld [vmem:[%s59] ss:$4 sm:$0x1f]
    %v61 = vld [vmem:[#allocation4] sm:$0xff]
    %63 = vrot.lane.b32.xlu0 %v61, 17
    %v64 = vpop.permute.xlu0 %63
    %v65 = vrot.slane %v64, 4
    %vm66 = vcmask 138240
    %v67 = vsel %vm66, %v65, %v64
    %vm70 = vcmask 1043592
    %vm71 = vcmask 1047556
    %vm72 = vmor %vm71, %vm70
    %73 = vst.msk [vmem:[#allocation2] sm:$0xff] %vm72, %v67
    %74 = vst.msk [vmem:[#allocation2 + $0x8] sm:$0xf] %vm50, %v65
    %s75 = scalar_lea.vmem [#allocation4], 8
    %v76 = vld [vmem:[%s75] sm:$0xff]
    %78 = vrot.lane.b32.xlu0 %v76, 34
    %v79 = vpop.permute.xlu0 %78
    %v80 = vrot.slane %v79, 4
    %vm81 = vcmask 277504
    %v82 = vsel %vm81, %v80, %v79
    %vm85 = vcmask 1043728
    %vm86 = vmor %vm71, %vm85
    %87 = vst.msk [vmem:[#allocation2 + $0x8] sm:$0xff] %vm86, %v82
    %vm88 = vcmask 273408
    %89 = vst.msk [vmem:[#allocation2 + $0x10] sm:$0xf] %vm88, %v80
    %v90 = vld [vmem:[#allocation2] sm:$0xff]
    %v91 = vld [vmem:[#allocation2 + $0x8] sm:$0xff]
    %v92 = vld [vmem:[#allocation2 + $0x10] sm:$0xf]
    %v94 = vlaneseq
    %v95 = vshrl.u32 %v94, 7
    %v96 = vsub.s32 0, %v95
    %v97 = vrot.slane %v56, %v96
    %v98 = vlaneseq
    %v99 = vshrl.u32 %v98, 7
    %v100 = vsub.s32 1, %v99
    %v101 = vrot.slane %v56, %v100
    %v102 = vlaneseq
    %v103 = vshrl.u32 %v102, 7
    %v104 = vsub.s32 2, %v103
    %v105 = vrot.slane %v56, %v104
    %v106 = vlaneseq
    %v107 = vshrl.u32 %v106, 7
    %v108 = vsub.s32 3, %v107
    %v109 = vrot.slane %v56, %v108
    %v110 = vlaneseq
    %v111 = vshrl.u32 %v110, 7
    %v112 = vsub.s32 4, %v111
    %v113 = vrot.slane %v56, %v112
    %v115 = vcombine.low %v97, %v101
    %v116 = vcombine.low %v105, %v109
    %v119 = vmul.f32 %v90, %v115
    %v120 = vmul.f32 %v91, %v116
    %v121 = vmul.f32 %v92, %v113
    %v124 = vcombine.high %v119, %v119
    %v125 = vcombine.high %v120, %v120
    %128 = vst [vmem:[#allocation3] sm:$0xf] %v119
    %129 = vst [vmem:[#allocation3 + $0x8] sm:$0xf] %v124
    %130 = vst [vmem:[#allocation3 + $0x10] sm:$0xf] %v120
    %131 = vst [vmem:[#allocation3 + $0x18] sm:$0xf] %v125
    %132 = vst.msk [vmem:[#allocation3 + $0x20] sm:$0xf] %vm50, %v121
    %v133 = vld [vmem:[#allocation2] sm:$0xff]
    %v134 = vld [vmem:[#allocation2 + $0x8] sm:$0xff]
    %v135 = vld [vmem:[#allocation2 + $0x10] sm:$0xf]
    %v139 = vcombine.low %v133, %v133
    %v140 = vcombine.low %v134, %v134
    %v141 = vcombine.low %v135, %v135
    %142 = vrot.lane.b32.xlu0 %v139, 127
    %v143 = vpop.permute.xlu0 %142
    %144 = vrot.lane.b32.xlu0 %v133, 127
    %v145 = vpop.permute.xlu0 %144
    %146 = vrot.lane.b32.xlu0 %v140, 127
    %v147 = vpop.permute.xlu0 %146
    %148 = vrot.lane.b32.xlu0 %v134, 127
    %v149 = vpop.permute.xlu0 %148
    %150 = vrot.lane.b32.xlu0 %v141, 127
    %v151 = vpop.permute.xlu0 %150
    %vm152 = vcmask 1039360
    %v153 = vsel %vm152, %v143, %v145
    %v154 = vsel %vm152, %v145, %v147
    %v155 = vsel %vm152, %v147, %v149
    %v156 = vsel %vm152, %v149, %v151
    %162 = vst [vmem:[#allocation3] sm:$0xf0] %v153
    %163 = vst [vmem:[#allocation3 + $0x8] sm:$0xf0] %v154
    %164 = vst [vmem:[#allocation3 + $0x10] sm:$0xf0] %v155
    %165 = vst [vmem:[#allocation3 + $0x18] sm:$0xf0] %v156
    %vm166 = vcmask 138244
    %167 = vst.msk [vmem:[#allocation3 + $0x20] sm:$0xf0] %vm166, %v151
    %v168 = vld [vmem:[#allocation2] sm:$0xff]
    %v169 = vld [vmem:[#allocation2 + $0x8] sm:$0xff]
    %v170 = vld [vmem:[#allocation2 + $0x10] sm:$0xf]
    %v172 = vlaneseq
    %v173 = vshrl.u32 %v172, 7
    %v174 = vsub.s32 0, %v173
    %v175 = vrot.slane %v58, %v174
    %v176 = vlaneseq
    %v177 = vshrl.u32 %v176, 7
    %v178 = vsub.s32 1, %v177
    %v179 = vrot.slane %v58, %v178
    %v180 = vlaneseq
    %v181 = vshrl.u32 %v180, 7
    %v182 = vsub.s32 2, %v181
    %v183 = vrot.slane %v58, %v182
    %v184 = vlaneseq
    %v185 = vshrl.u32 %v184, 7
    %v186 = vsub.s32 3, %v185
    %v187 = vrot.slane %v58, %v186
    %v188 = vlaneseq
    %v189 = vshrl.u32 %v188, 7
    %v190 = vsub.s32 4, %v189
    %v191 = vrot.slane %v58, %v190
    %v192 = vcombine.low %v175, %v179
    %v193 = vcombine.low %v183, %v187
    %194 = vrot.lane.b32.xlu0 %v192, 2
    %v195 = vpop.permute.xlu0 %194
    %196 = vrot.lane.b32.xlu0 %v193, 2
    %v197 = vpop.permute.xlu0 %196
    %198 = vrot.lane.b32.xlu0 %v191, 2
    %v199 = vpop.permute.xlu0 %198
    %v200 = vrot.slane %v195, 4
    %v201 = vrot.slane %v197, 4
    %vm202 = vcmask 15360
    %v203 = vsel %vm202, %v200, %v195
    %vm204 = vcmask 1043456
    %v205 = vsel %vm204, %v200, %v201
    %v206 = vsel %vm202, %v205, %v197
    %v207 = vsel %vm202, %v201, %v199
    %v211 = vmul.f32 %v168, %v203
    %v212 = vmul.f32 %v169, %v206
    %v213 = vmul.f32 %v170, %v207
    %v217 = vcombine.high %v211, %v211
    %v218 = vcombine.high %v212, %v212
    %219 = vrot.lane.b32.xlu0 %v211, 126
    %v220 = vpop.permute.xlu0 %219
    %221 = vrot.lane.b32.xlu0 %v217, 126
    %v222 = vpop.permute.xlu0 %221
    %223 = vrot.lane.b32.xlu0 %v212, 126
    %v224 = vpop.permute.xlu0 %223
    %225 = vrot.lane.b32.xlu0 %v218, 126
    %v226 = vpop.permute.xlu0 %225
    %227 = vrot.lane.b32.xlu0 %v213, 126
    %v228 = vpop.permute.xlu0 %227
    %vm229 = vcmask 1031168
    %v230 = vsel %vm229, %v220, %v222
    %v231 = vsel %vm229, %v222, %v224
    %v232 = vsel %vm229, %v224, %v226
    %v233 = vsel %vm229, %v226, %v228
    %239 = vst [vmem:[#allocation3 + $0x28] sm:$0xf] %v230
    %240 = vst [vmem:[#allocation3 + $0x30] sm:$0xf] %v231
    %241 = vst [vmem:[#allocation3 + $0x38] sm:$0xf] %v232
    %242 = vst [vmem:[#allocation3 + $0x40] sm:$0xf] %v233
    %243 = vst.msk [vmem:[#allocation3 + $0x48] sm:$0xf] %vm50, %v228
    %v244 = vld [vmem:[#allocation2] sm:$0xff]
    %v245 = vld [vmem:[#allocation2 + $0x8] sm:$0xff]
    %v246 = vld [vmem:[#allocation2 + $0x10] sm:$0xf]
    %247 = vrot.lane.b32.xlu0 %v115, 16
    %v248 = vpop.permute.xlu0 %247
    %249 = vrot.lane.b32.xlu0 %v116, 16
    %v250 = vpop.permute.xlu0 %249
    %251 = vrot.lane.b32.xlu0 %v113, 16
    %v252 = vpop.permute.xlu0 %251
    %v253 = vrot.slane %v248, 4
    %v254 = vrot.slane %v250, 4
    %vm255 = vcmask 130048
    %v256 = vsel %vm255, %v253, %v248
    %v257 = vsel %vm204, %v253, %v254
    %v258 = vsel %vm255, %v257, %v250
    %v259 = vsel %vm255, %v254, %v252
    %v263 = vmul.f32 %v244, %v256
    %v264 = vmul.f32 %v245, %v258
    %v265 = vmul.f32 %v246, %v259
    %v269 = vcombine.low %v263, %v263
    %v270 = vcombine.low %v264, %v264
    %v271 = vcombine.low %v265, %v265
    %272 = vrot.lane.b32.xlu0 %v269, 112
    %v273 = vpop.permute.xlu0 %272
    %274 = vrot.lane.b32.xlu0 %v263, 112
    %v275 = vpop.permute.xlu0 %274
    %276 = vrot.lane.b32.xlu0 %v270, 112
    %v277 = vpop.permute.xlu0 %276
    %278 = vrot.lane.b32.xlu0 %v264, 112
    %v279 = vpop.permute.xlu0 %278
    %280 = vrot.lane.b32.xlu0 %v271, 112
    %v281 = vpop.permute.xlu0 %280
    %vm282 = vcmask 916480
    %v283 = vsel %vm282, %v273, %v275
    %v284 = vsel %vm282, %v275, %v277
    %v285 = vsel %vm282, %v277, %v279
    %v286 = vsel %vm282, %v279, %v281
    %292 = vst [vmem:[#allocation3 + $0x28] sm:$0xf0] %v283
    %293 = vst [vmem:[#allocation3 + $0x30] sm:$0xf0] %v284
    %294 = vst [vmem:[#allocation3 + $0x38] sm:$0xf0] %v285
    %295 = vst [vmem:[#allocation3 + $0x40] sm:$0xf0] %v286
    %296 = vst.msk [vmem:[#allocation3 + $0x48] sm:$0xf0] %vm166, %v281
    %v297 = vld [vmem:[#allocation2] sm:$0xff]
    %v298 = vld [vmem:[#allocation2 + $0x8] sm:$0xff]
    %v299 = vld [vmem:[#allocation2 + $0x10] sm:$0xf]
    %v303 = vcombine.high %v297, %v297
    %v304 = vcombine.high %v298, %v298
    %305 = vrot.lane.b32.xlu0 %v297, 111
    %v306 = vpop.permute.xlu0 %305
    %307 = vrot.lane.b32.xlu0 %v303, 111
    %v308 = vpop.permute.xlu0 %307
    %309 = vrot.lane.b32.xlu0 %v298, 111
    %v310 = vpop.permute.xlu0 %309
    %311 = vrot.lane.b32.xlu0 %v304, 111
    %v312 = vpop.permute.xlu0 %311
    %313 = vrot.lane.b32.xlu0 %v299, 111
    %v314 = vpop.permute.xlu0 %313
    %vm315 = vcmask 908288
    %v316 = vsel %vm315, %v306, %v308
    %v317 = vsel %vm315, %v308, %v310
    %v318 = vsel %vm315, %v310, %v312
    %v319 = vsel %vm315, %v312, %v314
    %325 = vst [vmem:[#allocation3 + $0x50] sm:$0xf] %v316
    %326 = vst [vmem:[#allocation3 + $0x58] sm:$0xf] %v317
    %327 = vst [vmem:[#allocation3 + $0x60] sm:$0xf] %v318
    %328 = vst [vmem:[#allocation3 + $0x68] sm:$0xf] %v319
    %329 = vst.msk [vmem:[#allocation3 + $0x70] sm:$0xf] %vm50, %v314
    %v330 = vld [vmem:[#allocation2] sm:$0xff]
    %v331 = vld [vmem:[#allocation2 + $0x8] sm:$0xff]
    %v332 = vld [vmem:[#allocation2 + $0x10] sm:$0xf]
    %333 = vrot.lane.b32.xlu0 %v192, 18
    %v334 = vpop.permute.xlu0 %333
    %335 = vrot.lane.b32.xlu0 %v193, 18
    %v336 = vpop.permute.xlu0 %335
    %337 = vrot.lane.b32.xlu0 %v191, 18
    %v338 = vpop.permute.xlu0 %337
    %v339 = vrot.slane %v334, 4
    %v340 = vrot.slane %v336, 4
    %vm341 = vcmask 146432
    %v342 = vsel %vm341, %v339, %v334
    %v343 = vsel %vm204, %v339, %v340
    %v344 = vsel %vm341, %v343, %v336
    %v345 = vsel %vm341, %v340, %v338
    %v349 = vmul.f32 %v330, %v342
    %v350 = vmul.f32 %v331, %v344
    %v351 = vmul.f32 %v332, %v345
    %v355 = vcombine.low %v349, %v349
    %v356 = vcombine.low %v350, %v350
    %v357 = vcombine.low %v351, %v351
    %358 = vrot.lane.b32.xlu0 %v355, 110
    %v359 = vpop.permute.xlu0 %358
    %360 = vrot.lane.b32.xlu0 %v349, 110
    %v361 = vpop.permute.xlu0 %360
    %362 = vrot.lane.b32.xlu0 %v356, 110
    %v363 = vpop.permute.xlu0 %362
    %364 = vrot.lane.b32.xlu0 %v350, 110
    %v365 = vpop.permute.xlu0 %364
    %366 = vrot.lane.b32.xlu0 %v357, 110
    %v367 = vpop.permute.xlu0 %366
    %vm368 = vcmask 900096
    %v369 = vsel %vm368, %v359, %v361
    %v370 = vsel %vm368, %v361, %v363
    %v371 = vsel %vm368, %v363, %v365
    %v372 = vsel %vm368, %v365, %v367
    %378 = vst [vmem:[#allocation3 + $0x50] sm:$0xf0] %v369
    %379 = vst [vmem:[#allocation3 + $0x58] sm:$0xf0] %v370
    %380 = vst [vmem:[#allocation3 + $0x60] sm:$0xf0] %v371
    %381 = vst [vmem:[#allocation3 + $0x68] sm:$0xf0] %v372
    %382 = vst.msk [vmem:[#allocation3 + $0x70] sm:$0xf0] %vm166, %v367
    %v383 = vld [vmem:[#allocation2] sm:$0xff]
    %v384 = vld [vmem:[#allocation2 + $0x8] sm:$0xff]
    %v385 = vld [vmem:[#allocation2 + $0x10] sm:$0xf]
    %386 = vrot.lane.b32.xlu0 %v115, 32
    %v387 = vpop.permute.xlu0 %386
    %388 = vrot.lane.b32.xlu0 %v116, 32
    %v389 = vpop.permute.xlu0 %388
    %390 = vrot.lane.b32.xlu0 %v113, 32
    %v391 = vpop.permute.xlu0 %390
    %v392 = vrot.slane %v387, 4
    %v393 = vrot.slane %v389, 4
    %vm394 = vcmask 261120
    %v395 = vsel %vm394, %v392, %v387
    %v396 = vsel %vm204, %v392, %v393
    %v397 = vsel %vm394, %v396, %v389
    %v398 = vsel %vm394, %v393, %v391
    %v402 = vmul.f32 %v383, %v395
    %v403 = vmul.f32 %v384, %v397
    %v404 = vmul.f32 %v385, %v398
    %v408 = vcombine.high %v402, %v402
    %v409 = vcombine.high %v403, %v403
    %410 = vrot.lane.b32.xlu0 %v402, 96
    %v411 = vpop.permute.xlu0 %410
    %412 = vrot.lane.b32.xlu0 %v408, 96
    %v413 = vpop.permute.xlu0 %412
    %414 = vrot.lane.b32.xlu0 %v403, 96
    %v415 = vpop.permute.xlu0 %414
    %416 = vrot.lane.b32.xlu0 %v409, 96
    %v417 = vpop.permute.xlu0 %416
    %418 = vrot.lane.b32.xlu0 %v404, 96
    %v419 = vpop.permute.xlu0 %418
    %vm420 = vcmask 785408
    %v421 = vsel %vm420, %v411, %v413
    %v422 = vsel %vm420, %v413, %v415
    %v423 = vsel %vm420, %v415, %v417
    %v424 = vsel %vm420, %v417, %v419
    %430 = vst [vmem:[#allocation3 + $0x78] sm:$0xf] %v421
    %431 = vst [vmem:[#allocation3 + $0x80] sm:$0xf] %v422
    %432 = vst [vmem:[#allocation3 + $0x88] sm:$0xf] %v423
    %433 = vst [vmem:[#allocation3 + $0x90] sm:$0xf] %v424
    %434 = vst.msk [vmem:[#allocation3 + $0x98] sm:$0xf] %vm50, %v419
    %v435 = vld [vmem:[#allocation2] sm:$0xff]
    %v436 = vld [vmem:[#allocation2 + $0x8] sm:$0xff]
    %v437 = vld [vmem:[#allocation2 + $0x10] sm:$0xf]
    %v441 = vcombine.low %v435, %v435
    %v442 = vcombine.low %v436, %v436
    %v443 = vcombine.low %v437, %v437
    %444 = vrot.lane.b32.xlu0 %v441, 95
    %v445 = vpop.permute.xlu0 %444
    %446 = vrot.lane.b32.xlu0 %v435, 95
    %v447 = vpop.permute.xlu0 %446
    %448 = vrot.lane.b32.xlu0 %v442, 95
    %v449 = vpop.permute.xlu0 %448
    %450 = vrot.lane.b32.xlu0 %v436, 95
    %v451 = vpop.permute.xlu0 %450
    %452 = vrot.lane.b32.xlu0 %v443, 95
    %v453 = vpop.permute.xlu0 %452
    %vm454 = vcmask 777216
    %v455 = vsel %vm454, %v445, %v447
    %v456 = vsel %vm454, %v447, %v449
    %v457 = vsel %vm454, %v449, %v451
    %v458 = vsel %vm454, %v451, %v453
    %464 = vst [vmem:[#allocation3 + $0x78] sm:$0xf0] %v455
    %465 = vst [vmem:[#allocation3 + $0x80] sm:$0xf0] %v456
    %466 = vst [vmem:[#allocation3 + $0x88] sm:$0xf0] %v457
    %467 = vst [vmem:[#allocation3 + $0x90] sm:$0xf0] %v458
    %468 = vst.msk [vmem:[#allocation3 + $0x98] sm:$0xf0] %vm166, %v453
    %v469 = vld [vmem:[#allocation2] sm:$0xff]
    %v470 = vld [vmem:[#allocation2 + $0x8] sm:$0xff]
    %v471 = vld [vmem:[#allocation2 + $0x10] sm:$0xf]
    %472 = vrot.lane.b32.xlu0 %v192, 34
    %v473 = vpop.permute.xlu0 %472
    %474 = vrot.lane.b32.xlu0 %v193, 34
    %v475 = vpop.permute.xlu0 %474
    %476 = vrot.lane.b32.xlu0 %v191, 34
    %v477 = vpop.permute.xlu0 %476
    %v478 = vrot.slane %v473, 4
    %v479 = vrot.slane %v475, 4
    %v480 = vsel %vm81, %v478, %v473
    %v481 = vsel %vm204, %v478, %v479
    %v482 = vsel %vm81, %v481, %v475
    %v483 = vsel %vm81, %v479, %v477
    %v487 = vmul.f32 %v469, %v480
    %v488 = vmul.f32 %v470, %v482
    %v489 = vmul.f32 %v471, %v483
    %v493 = vcombine.high %v487, %v487
    %v494 = vcombine.high %v488, %v488
    %495 = vrot.lane.b32.xlu0 %v487, 94
    %v496 = vpop.permute.xlu0 %495
    %497 = vrot.lane.b32.xlu0 %v493, 94
    %v498 = vpop.permute.xlu0 %497
    %499 = vrot.lane.b32.xlu0 %v488, 94
    %v500 = vpop.permute.xlu0 %499
    %501 = vrot.lane.b32.xlu0 %v494, 94
    %v502 = vpop.permute.xlu0 %501
    %503 = vrot.lane.b32.xlu0 %v489, 94
    %v504 = vpop.permute.xlu0 %503
    %vm505 = vcmask 769024
    %v506 = vsel %vm505, %v496, %v498
    %v507 = vsel %vm505, %v498, %v500
    %v508 = vsel %vm505, %v500, %v502
    %v509 = vsel %vm505, %v502, %v504
    %515 = vst [vmem:[#allocation3 + $0xa0] sm:$0xf] %v506
    %516 = vst [vmem:[#allocation3 + $0xa8] sm:$0xf] %v507
    %517 = vst [vmem:[#allocation3 + $0xb0] sm:$0xf] %v508
    %518 = vst [vmem:[#allocation3 + $0xb8] sm:$0xf] %v509
    %519 = vst.msk [vmem:[#allocation3 + $0xc0] sm:$0xf] %vm50, %v504
    %v520 = vld [vmem:[%s1] sm:$0xf]
    %v521 = vld [vmem:[#allocation3] sm:$0xff]
    %v522 = vld [vmem:[#allocation3 + $0x8] sm:$0xff]
    %v523 = vld [vmem:[#allocation3 + $0x10] sm:$0xff]
    %v524 = vld [vmem:[#allocation3 + $0x18] sm:$0xff]
    %v525 = vld [vmem:[#allocation3 + $0x20] sm:$0xff]
    %v526 = vld [vmem:[#allocation3 + $0x28] sm:$0xff]
    %v527 = vld [vmem:[#allocation3 + $0x30] sm:$0xff]
    %v528 = vld [vmem:[#allocation3 + $0x38] sm:$0xff]
    %v529 = vld [vmem:[#allocation3 + $0x40] sm:$0xff]
    %v530 = vld [vmem:[#allocation3 + $0x48] sm:$0xff]
    %v531 = vld [vmem:[#allocation3 + $0x50] sm:$0xff]
    %v532 = vld [vmem:[#allocation3 + $0x58] sm:$0xff]
    %v533 = vld [vmem:[#allocation3 + $0x60] sm:$0xff]
    %v534 = vld [vmem:[#allocation3 + $0x68] sm:$0xff]
    %v535 = vld [vmem:[#allocation3 + $0x70] sm:$0xff]
    %v536 = vld [vmem:[#allocation3 + $0x78] sm:$0xff]
    %v537 = vld [vmem:[#allocation3 + $0x80] sm:$0xff]
    %v538 = vld [vmem:[#allocation3 + $0x88] sm:$0xff]
    %v539 = vld [vmem:[#allocation3 + $0x90] sm:$0xff]
    %v540 = vld [vmem:[#allocation3 + $0x98] sm:$0xff]
    %v541 = vld [vmem:[#allocation3 + $0xa0] sm:$0xf]
    %v542 = vld [vmem:[#allocation3 + $0xa8] sm:$0xf]
    %v543 = vld [vmem:[#allocation3 + $0xb0] sm:$0xf]
    %v544 = vld [vmem:[#allocation3 + $0xb8] sm:$0xf]
    %v545 = vld [vmem:[#allocation3 + $0xc0] sm:$0xf]
    %v546 = vld [vmem:[%s2] sm:$0xf]
    %548 = vset.pattern.permute.xlu0 0
    %549 = vperm.xlu0 %548, %v546
    %v550 = vpop.permute.xlu0 %549
    %vm552 = vcmask 293888
    %v554 = vsel %vm552, %v520, 0
    %v557 = vsel %vm204, %v541, 0
    %v560 = vsel %vm204, %v542, 0
    %v563 = vsel %vm204, %v543, 0
    %v566 = vsel %vm204, %v544, 0
    %v569 = vsel %vm204, %v545, 0
    %571 = vmatprep.subr.mxu0 0.0
    %572 = vmatpush1.msra.mxu0 0.0
    %573 = vmatprep.subr.mxu0 0.0
    %574 = vmatpush1.msra.mxu0 0.0
    %575 = vmatprep.subr.mxu0 0.0
    %576 = vmatpush1.msra.mxu0 0.0
    %577 = vmatprep.subr.mxu0 0.0
    %578 = vmatpush1.msra.mxu0 0.0
    %579 = vmatprep.subr.mxu0 0.0
    %580 = vmatpush1.msra.mxu0 0.0
    %581 = vmatprep.subr.mxu0 0.0
    %582 = vmatpush1.msra.mxu0 0.0
    %583 = vmatprep.subr.mxu0 0.0
    %584 = vmatpush1.msra.mxu0 0.0
    %585 = vmatprep.subr.mxu0 0.0
    %586 = vmatpush1.msra.mxu0 0.0
    %587 = vmatprep.subr.mxu0 0.0
    %588 = vmatpush1.msra.mxu0 0.0
    %589 = vmatprep.subr.mxu0 0.0
    %590 = vmatpush1.msra.mxu0 0.0
    %591 = vmatprep.subr.mxu0 0.0
    %592 = vmatpush1.msra.mxu0 0.0
    %593 = vmatprep.subr.mxu0 %v560
    %594 = vmatpush1.msra.mxu0 %v557
    %595 = vmatprep.subr.mxu0 %v537
    %596 = vmatpush1.msra.mxu0 %v536
    %597 = vmatprep.subr.mxu0 %v532
    %598 = vmatpush1.msra.mxu0 %v531
    %599 = vmatprep.subr.mxu0 %v527
    %600 = vmatpush1.msra.mxu0 %v526
    %601 = vmatprep.subr.mxu0 %v522
    %602 = vmatpush1.msra.mxu0 %v521
    %603 = vmatprep.subr.mxu0 0.0
    %604 = vmatpush2.msra.mxu0 0.0
    %605 = vmatprep.subr.mxu0 0.0
    %606 = vmatpush2.msra.mxu0 0.0
    %607 = vmatprep.subr.mxu0 0.0
    %608 = vmatpush2.msra.mxu0 0.0
    %609 = vmatprep.subr.mxu0 0.0
    %610 = vmatpush2.msra.mxu0 0.0
    %611 = vmatprep.subr.mxu0 0.0
    %612 = vmatpush2.msra.mxu0 0.0
    %613 = vmatprep.subr.mxu0 0.0
    %614 = vmatpush2.msra.mxu0 0.0
    %615 = vmatprep.subr.mxu0 0.0
    %616 = vmatpush2.msra.mxu0 0.0
    %617 = vmatprep.subr.mxu0 0.0
    %618 = vmatpush2.msra.mxu0 0.0
    %619 = vmatprep.subr.mxu0 0.0
    %620 = vmatpush2.msra.mxu0 0.0
    %621 = vmatprep.subr.mxu0 0.0
    %622 = vmatpush2.msra.mxu0 0.0
    %623 = vmatprep.subr.mxu0 0.0
    %624 = vmatpush2.msra.mxu0 0.0
    %625 = vmatprep.subr.mxu0 0.0
    %626 = vmatpush2.msra.mxu0 0.0
    %627 = vmatprep.subr.mxu0 0.0
    %628 = vmatpush2.msra.mxu0 0.0
    %629 = vmatprep.subr.mxu0 0.0
    %630 = vmatpush2.msra.mxu0 0.0
    %631 = vmatprep.subr.mxu0 0.0
    %632 = vmatpush2.msra.mxu0 0.0
    %633 = vmatprep.subr.mxu0 0.0
    %634 = vmatpush2.msra.mxu0 0.0
    %635 = vmatprep.mubr.f32.mxu0 0.0
    %636 = vmatmul.mubr.f32.gmra.mxu0 %v554
    %v637 = vpop.f32.mrf.mxu0
    %v638 = vadd.f32 %v550, %v637
    %v639 = vpop.f32.mrf.mxu0
    %v640 = vadd.f32 %v550, %v639
    %641 = vdwg.mxu0
    %642 = vmatprep.subr.mxu0 0.0
    %643 = vmatpush1.msra.mxu0 0.0
    %644 = vmatprep.subr.mxu0 0.0
    %645 = vmatpush1.msra.mxu0 0.0
    %646 = vmatprep.subr.mxu0 0.0
    %647 = vmatpush1.msra.mxu0 0.0
    %648 = vmatprep.subr.mxu0 0.0
    %649 = vmatpush1.msra.mxu0 0.0
    %650 = vmatprep.subr.mxu0 0.0
    %651 = vmatpush1.msra.mxu0 0.0
    %652 = vmatprep.subr.mxu0 0.0
    %653 = vmatpush1.msra.mxu0 0.0
    %654 = vmatprep.subr.mxu0 0.0
    %655 = vmatpush1.msra.mxu0 0.0
    %656 = vmatprep.subr.mxu0 0.0
    %657 = vmatpush1.msra.mxu0 0.0
    %658 = vmatprep.subr.mxu0 0.0
    %659 = vmatpush1.msra.mxu0 0.0
    %660 = vmatprep.subr.mxu0 0.0
    %661 = vmatpush1.msra.mxu0 0.0
    %662 = vmatprep.subr.mxu0 0.0
    %663 = vmatpush1.msra.mxu0 0.0
    %664 = vmatprep.subr.mxu0 %v566
    %665 = vmatpush1.msra.mxu0 %v563
    %666 = vmatprep.subr.mxu0 %v539
    %667 = vmatpush1.msra.mxu0 %v538
    %668 = vmatprep.subr.mxu0 %v534
    %669 = vmatpush1.msra.mxu0 %v533
    %670 = vmatprep.subr.mxu0 %v529
    %671 = vmatpush1.msra.mxu0 %v528
    %672 = vmatprep.subr.mxu0 %v524
    %673 = vmatpush1.msra.mxu0 %v523
    %674 = vmatprep.subr.mxu0 0.0
    %675 = vmatpush2.msra.mxu0 0.0
    %676 = vmatprep.subr.mxu0 0.0
    %677 = vmatpush2.msra.mxu0 0.0
    %678 = vmatprep.subr.mxu0 0.0
    %679 = vmatpush2.msra.mxu0 0.0
    %680 = vmatprep.subr.mxu0 0.0
    %681 = vmatpush2.msra.mxu0 0.0
    %682 = vmatprep.subr.mxu0 0.0
    %683 = vmatpush2.msra.mxu0 0.0
    %684 = vmatprep.subr.mxu0 0.0
    %685 = vmatpush2.msra.mxu0 0.0
    %686 = vmatprep.subr.mxu0 0.0
    %687 = vmatpush2.msra.mxu0 0.0
    %688 = vmatprep.subr.mxu0 0.0
    %689 = vmatpush2.msra.mxu0 0.0
    %690 = vmatprep.subr.mxu0 0.0
    %691 = vmatpush2.msra.mxu0 0.0
    %692 = vmatprep.subr.mxu0 0.0
    %693 = vmatpush2.msra.mxu0 0.0
    %694 = vmatprep.subr.mxu0 0.0
    %695 = vmatpush2.msra.mxu0 0.0
    %696 = vmatprep.subr.mxu0 0.0
    %697 = vmatpush2.msra.mxu0 0.0
    %698 = vmatprep.subr.mxu0 0.0
    %699 = vmatpush2.msra.mxu0 0.0
    %700 = vmatprep.subr.mxu0 0.0
    %701 = vmatpush2.msra.mxu0 0.0
    %702 = vmatprep.subr.mxu0 0.0
    %703 = vmatpush2.msra.mxu0 0.0
    %704 = vmatprep.subr.mxu0 0.0
    %705 = vmatpush2.msra.mxu0 0.0
    %706 = vmatprep.mubr.f32.mxu0 0.0
    %707 = vmatmul.mubr.f32.gmra.mxu0 %v554
    %v708 = vpop.f32.mrf.mxu0
    %v709 = vadd.f32 %v550, %v708
    %v710 = vpop.f32.mrf.mxu0
    %v711 = vadd.f32 %v550, %v710
    %712 = vdwg.mxu0
    %713 = vmatprep.subr.mxu0 0.0
    %714 = vmatpush1.msra.mxu0 0.0
    %715 = vmatprep.subr.mxu0 0.0
    %716 = vmatpush1.msra.mxu0 0.0
    %717 = vmatprep.subr.mxu0 0.0
    %718 = vmatpush1.msra.mxu0 0.0
    %719 = vmatprep.subr.mxu0 0.0
    %720 = vmatpush1.msra.mxu0 0.0
    %721 = vmatprep.subr.mxu0 0.0
    %722 = vmatpush1.msra.mxu0 0.0
    %723 = vmatprep.subr.mxu0 0.0
    %724 = vmatpush1.msra.mxu0 0.0
    %725 = vmatprep.subr.mxu0 0.0
    %726 = vmatpush1.msra.mxu0 0.0
    %727 = vmatprep.subr.mxu0 0.0
    %728 = vmatpush1.msra.mxu0 0.0
    %729 = vmatprep.subr.mxu0 0.0
    %730 = vmatpush1.msra.mxu0 0.0
    %731 = vmatprep.subr.mxu0 0.0
    %732 = vmatpush1.msra.mxu0 0.0
    %733 = vmatprep.subr.mxu0 0.0
    %734 = vmatpush1.msra.mxu0 0.0
    %735 = vmatprep.subr.mxu0 0.0
    %736 = vmatpush1.msra.mxu0 %v569
    %737 = vmatprep.subr.mxu0 0.0
    %738 = vmatpush1.msra.mxu0 %v540
    %739 = vmatprep.subr.mxu0 0.0
    %740 = vmatpush1.msra.mxu0 %v535
    %741 = vmatprep.subr.mxu0 0.0
    %742 = vmatpush1.msra.mxu0 %v530
    %743 = vmatprep.subr.mxu0 0.0
    %744 = vmatpush1.msra.mxu0 %v525
    %745 = vmatprep.subr.mxu0 0.0
    %746 = vmatpush2.msra.mxu0 0.0
    %747 = vmatprep.subr.mxu0 0.0
    %748 = vmatpush2.msra.mxu0 0.0
    %749 = vmatprep.subr.mxu0 0.0
    %750 = vmatpush2.msra.mxu0 0.0
    %751 = vmatprep.subr.mxu0 0.0
    %752 = vmatpush2.msra.mxu0 0.0
    %753 = vmatprep.subr.mxu0 0.0
    %754 = vmatpush2.msra.mxu0 0.0
    %755 = vmatprep.subr.mxu0 0.0
    %756 = vmatpush2.msra.mxu0 0.0
    %757 = vmatprep.subr.mxu0 0.0
    %758 = vmatpush2.msra.mxu0 0.0
    %759 = vmatprep.subr.mxu0 0.0
    %760 = vmatpush2.msra.mxu0 0.0
    %761 = vmatprep.subr.mxu0 0.0
    %762 = vmatpush2.msra.mxu0 0.0
    %763 = vmatprep.subr.mxu0 0.0
    %764 = vmatpush2.msra.mxu0 0.0
    %765 = vmatprep.subr.mxu0 0.0
    %766 = vmatpush2.msra.mxu0 0.0
    %767 = vmatprep.subr.mxu0 0.0
    %768 = vmatpush2.msra.mxu0 0.0
    %769 = vmatprep.subr.mxu0 0.0
    %770 = vmatpush2.msra.mxu0 0.0
    %771 = vmatprep.subr.mxu0 0.0
    %772 = vmatpush2.msra.mxu0 0.0
    %773 = vmatprep.subr.mxu0 0.0
    %774 = vmatpush2.msra.mxu0 0.0
    %775 = vmatprep.subr.mxu0 0.0
    %776 = vmatpush2.msra.mxu0 0.0
    %777 = vmatprep.mubr.f32.mxu0 0.0
    %778 = vmatmul.mubr.f32.gmra.mxu0 %v554
    %v779 = vpop.f32.mrf.mxu0
    %v780 = vadd.f32 %v550, %v779
    %v781 = vpop.f32.mrf.mxu0
    %782 = vdwg.mxu0
    %v783 = vmax.f32 %v638, 0.0
    %v784 = vmax.f32 %v640, 0.0
    %v785 = vmax.f32 %v709, 0.0
    %v786 = vmax.f32 %v711, 0.0
    %v787 = vmax.f32 %v780, 0.0
    %v789 = vlaneseq
    %v790 = vshrl.u32 %v789, 7
    %v791 = vsub.s32 0, %v790
    %v792 = vrot.slane %v60, %v791
    %v793 = vlaneseq
    %v794 = vshrl.u32 %v793, 7
    %v795 = vsub.s32 1, %v794
    %v796 = vrot.slane %v60, %v795
    %v797 = vlaneseq
    %v798 = vshrl.u32 %v797, 7
    %v799 = vsub.s32 2, %v798
    %v800 = vrot.slane %v60, %v799
    %v801 = vlaneseq
    %v802 = vshrl.u32 %v801, 7
    %v803 = vsub.s32 3, %v802
    %v804 = vrot.slane %v60, %v803
    %v805 = vlaneseq
    %v806 = vshrl.u32 %v805, 7
    %v807 = vsub.s32 4, %v806
    %v808 = vrot.slane %v60, %v807
    %v814 = vmul.f32 %v783, %v792
    %v815 = vmul.f32 %v784, %v796
    %v816 = vmul.f32 %v785, %v800
    %v817 = vmul.f32 %v786, %v804
    %v818 = vmul.f32 %v787, %v808
    %v824 = vcombine.low %v814, %v815
    %v825 = vcombine.low %v816, %v817
    %826 = vrot.lane.b32.xlu0 %v824, 17
    %v827 = vpop.permute.xlu0 %826
    %828 = vrot.lane.b32.xlu0 %v825, 17
    %v829 = vpop.permute.xlu0 %828
    %830 = vrot.lane.b32.xlu0 %v818, 17
    %v831 = vpop.permute.xlu0 %830
    %v832 = vrot.slane %v827, 4
    %v833 = vrot.slane %v829, 4
    %v834 = vsel %vm66, %v832, %v827
    %v835 = vsel %vm204, %v832, %v833
    %v836 = vsel %vm66, %v835, %v829
    %v837 = vsel %vm66, %v833, %v831
    %841 = vst.msk [vmem:[#allocation2] sm:$0xff] %vm72, %v834
    %842 = vst [vmem:[#allocation2 + $0x8] sm:$0xff] %v836
    %843 = vst.msk [vmem:[#allocation2 + $0x10] sm:$0xf] %vm88, %v837
    %v844 = vld [vmem:[#allocation2] sm:$0xff]
    %v845 = vld [vmem:[#allocation2 + $0x8] sm:$0xff]
    %v846 = vld [vmem:[#allocation2 + $0x10] sm:$0xf]
    %v847 = vmul.f32 %v844, %v115
    %v848 = vmul.f32 %v845, %v116
    %v849 = vmul.f32 %v846, %v113
    %v852 = vcombine.high %v847, %v847
    %v853 = vcombine.high %v848, %v848
    %856 = vst [vmem:[#allocation3] sm:$0xf] %v847
    %857 = vst [vmem:[#allocation3 + $0x8] sm:$0xf] %v852
    %858 = vst [vmem:[#allocation3 + $0x10] sm:$0xf] %v848
    %859 = vst [vmem:[#allocation3 + $0x18] sm:$0xf] %v853
    %860 = vst.msk [vmem:[#allocation3 + $0x20] sm:$0xf] %vm50, %v849
    %v861 = vld [vmem:[#allocation2] sm:$0xff]
    %v862 = vld [vmem:[#allocation2 + $0x8] sm:$0xff]
    %v863 = vld [vmem:[#allocation2 + $0x10] sm:$0xf]
    %v867 = vcombine.low %v861, %v861
    %v868 = vcombine.low %v862, %v862
    %v869 = vcombine.low %v863, %v863
    %870 = vrot.lane.b32.xlu0 %v867, 127
    %v871 = vpop.permute.xlu0 %870
    %872 = vrot.lane.b32.xlu0 %v861, 127
    %v873 = vpop.permute.xlu0 %872
    %874 = vrot.lane.b32.xlu0 %v868, 127
    %v875 = vpop.permute.xlu0 %874
    %876 = vrot.lane.b32.xlu0 %v862, 127
    %v877 = vpop.permute.xlu0 %876
    %878 = vrot.lane.b32.xlu0 %v869, 127
    %v879 = vpop.permute.xlu0 %878
    %v880 = vsel %vm152, %v871, %v873
    %v881 = vsel %vm152, %v873, %v875
    %v882 = vsel %vm152, %v875, %v877
    %v883 = vsel %vm152, %v877, %v879
    %889 = vst [vmem:[#allocation3] sm:$0xf0] %v880
    %890 = vst [vmem:[#allocation3 + $0x8] sm:$0xf0] %v881
    %891 = vst [vmem:[#allocation3 + $0x10] sm:$0xf0] %v882
    %892 = vst [vmem:[#allocation3 + $0x18] sm:$0xf0] %v883
    %893 = vst.msk [vmem:[#allocation3 + $0x20] sm:$0xf0] %vm166, %v879
    %v894 = vld [vmem:[#allocation2] sm:$0xff]
    %v895 = vld [vmem:[#allocation2 + $0x8] sm:$0xff]
    %v896 = vld [vmem:[#allocation2 + $0x10] sm:$0xf]
    %v897 = vmul.f32 %v894, %v203
    %v898 = vmul.f32 %v895, %v206
    %v899 = vmul.f32 %v896, %v207
    %v903 = vcombine.high %v897, %v897
    %v904 = vcombine.high %v898, %v898
    %905 = vrot.lane.b32.xlu0 %v897, 126
    %v906 = vpop.permute.xlu0 %905
    %907 = vrot.lane.b32.xlu0 %v903, 126
    %v908 = vpop.permute.xlu0 %907
    %909 = vrot.lane.b32.xlu0 %v898, 126
    %v910 = vpop.permute.xlu0 %909
    %911 = vrot.lane.b32.xlu0 %v904, 126
    %v912 = vpop.permute.xlu0 %911
    %913 = vrot.lane.b32.xlu0 %v899, 126
    %v914 = vpop.permute.xlu0 %913
    %v915 = vsel %vm229, %v906, %v908
    %v916 = vsel %vm229, %v908, %v910
    %v917 = vsel %vm229, %v910, %v912
    %v918 = vsel %vm229, %v912, %v914
    %924 = vst [vmem:[#allocation3 + $0x28] sm:$0xf] %v915
    %925 = vst [vmem:[#allocation3 + $0x30] sm:$0xf] %v916
    %926 = vst [vmem:[#allocation3 + $0x38] sm:$0xf] %v917
    %927 = vst [vmem:[#allocation3 + $0x40] sm:$0xf] %v918
    %928 = vst.msk [vmem:[#allocation3 + $0x48] sm:$0xf] %vm50, %v914
    %v929 = vld [vmem:[#allocation2] sm:$0xff]
    %v930 = vld [vmem:[#allocation2 + $0x8] sm:$0xff]
    %v931 = vld [vmem:[#allocation2 + $0x10] sm:$0xf]
    %v932 = vmul.f32 %v929, %v256
    %v933 = vmul.f32 %v930, %v258
    %v934 = vmul.f32 %v931, %v259
    %v938 = vcombine.low %v932, %v932
    %v939 = vcombine.low %v933, %v933
    %v940 = vcombine.low %v934, %v934
    %941 = vrot.lane.b32.xlu0 %v938, 112
    %v942 = vpop.permute.xlu0 %941
    %943 = vrot.lane.b32.xlu0 %v932, 112
    %v944 = vpop.permute.xlu0 %943
    %945 = vrot.lane.b32.xlu0 %v939, 112
    %v946 = vpop.permute.xlu0 %945
    %947 = vrot.lane.b32.xlu0 %v933, 112
    %v948 = vpop.permute.xlu0 %947
    %949 = vrot.lane.b32.xlu0 %v940, 112
    %v950 = vpop.permute.xlu0 %949
    %v951 = vsel %vm282, %v942, %v944
    %v952 = vsel %vm282, %v944, %v946
    %v953 = vsel %vm282, %v946, %v948
    %v954 = vsel %vm282, %v948, %v950
    %960 = vst [vmem:[#allocation3 + $0x28] sm:$0xf0] %v951
    %961 = vst [vmem:[#allocation3 + $0x30] sm:$0xf0] %v952
    %962 = vst [vmem:[#allocation3 + $0x38] sm:$0xf0] %v953
    %963 = vst [vmem:[#allocation3 + $0x40] sm:$0xf0] %v954
    %964 = vst.msk [vmem:[#allocation3 + $0x48] sm:$0xf0] %vm166, %v950
    %v965 = vld [vmem:[#allocation2] sm:$0xff]
    %v966 = vld [vmem:[#allocation2 + $0x8] sm:$0xff]
    %v967 = vld [vmem:[#allocation2 + $0x10] sm:$0xf]
    %v971 = vcombine.high %v965, %v965
    %v972 = vcombine.high %v966, %v966
    %973 = vrot.lane.b32.xlu0 %v965, 111
    %v974 = vpop.permute.xlu0 %973
    %975 = vrot.lane.b32.xlu0 %v971, 111
    %v976 = vpop.permute.xlu0 %975
    %977 = vrot.lane.b32.xlu0 %v966, 111
    %v978 = vpop.permute.xlu0 %977
    %979 = vrot.lane.b32.xlu0 %v972, 111
    %v980 = vpop.permute.xlu0 %979
    %981 = vrot.lane.b32.xlu0 %v967, 111
    %v982 = vpop.permute.xlu0 %981
    %v983 = vsel %vm315, %v974, %v976
    %v984 = vsel %vm315, %v976, %v978
    %v985 = vsel %vm315, %v978, %v980
    %v986 = vsel %vm315, %v980, %v982
    %992 = vst [vmem:[#allocation3 + $0x50] sm:$0xf] %v983
    %993 = vst [vmem:[#allocation3 + $0x58] sm:$0xf] %v984
    %994 = vst [vmem:[#allocation3 + $0x60] sm:$0xf] %v985
    %995 = vst [vmem:[#allocation3 + $0x68] sm:$0xf] %v986
    %996 = vst.msk [vmem:[#allocation3 + $0x70] sm:$0xf] %vm50, %v982
    %v997 = vld [vmem:[#allocation2] sm:$0xff]
    %v998 = vld [vmem:[#allocation2 + $0x8] sm:$0xff]
    %v999 = vld [vmem:[#allocation2 + $0x10] sm:$0xf]
    %v1000 = vmul.f32 %v997, %v342
    %v1001 = vmul.f32 %v998, %v344
    %v1002 = vmul.f32 %v999, %v345
    %v1006 = vcombine.low %v1000, %v1000
    %v1007 = vcombine.low %v1001, %v1001
    %v1008 = vcombine.low %v1002, %v1002
    %1009 = vrot.lane.b32.xlu0 %v1006, 110
    %v1010 = vpop.permute.xlu0 %1009
    %1011 = vrot.lane.b32.xlu0 %v1000, 110
    %v1012 = vpop.permute.xlu0 %1011
    %1013 = vrot.lane.b32.xlu0 %v1007, 110
    %v1014 = vpop.permute.xlu0 %1013
    %1015 = vrot.lane.b32.xlu0 %v1001, 110
    %v1016 = vpop.permute.xlu0 %1015
    %1017 = vrot.lane.b32.xlu0 %v1008, 110
    %v1018 = vpop.permute.xlu0 %1017
    %v1019 = vsel %vm368, %v1010, %v1012
    %v1020 = vsel %vm368, %v1012, %v1014
    %v1021 = vsel %vm368, %v1014, %v1016
    %v1022 = vsel %vm368, %v1016, %v1018
    %1028 = vst [vmem:[#allocation3 + $0x50] sm:$0xf0] %v1019
    %1029 = vst [vmem:[#allocation3 + $0x58] sm:$0xf0] %v1020
    %1030 = vst [vmem:[#allocation3 + $0x60] sm:$0xf0] %v1021
    %1031 = vst [vmem:[#allocation3 + $0x68] sm:$0xf0] %v1022
    %1032 = vst.msk [vmem:[#allocation3 + $0x70] sm:$0xf0] %vm166, %v1018
    %v1033 = vld [vmem:[#allocation2] sm:$0xff]
    %v1034 = vld [vmem:[#allocation2 + $0x8] sm:$0xff]
    %v1035 = vld [vmem:[#allocation2 + $0x10] sm:$0xf]
    %v1036 = vmul.f32 %v1033, %v395
    %v1037 = vmul.f32 %v1034, %v397
    %v1038 = vmul.f32 %v1035, %v398
    %v1042 = vcombine.high %v1036, %v1036
    %v1043 = vcombine.high %v1037, %v1037
    %1044 = vrot.lane.b32.xlu0 %v1036, 96
    %v1045 = vpop.permute.xlu0 %1044
    %1046 = vrot.lane.b32.xlu0 %v1042, 96
    %v1047 = vpop.permute.xlu0 %1046
    %1048 = vrot.lane.b32.xlu0 %v1037, 96
    %v1049 = vpop.permute.xlu0 %1048
    %1050 = vrot.lane.b32.xlu0 %v1043, 96
    %v1051 = vpop.permute.xlu0 %1050
    %1052 = vrot.lane.b32.xlu0 %v1038, 96
    %v1053 = vpop.permute.xlu0 %1052
    %v1054 = vsel %vm420, %v1045, %v1047
    %v1055 = vsel %vm420, %v1047, %v1049
    %v1056 = vsel %vm420, %v1049, %v1051
    %v1057 = vsel %vm420, %v1051, %v1053
    %1063 = vst [vmem:[#allocation3 + $0x78] sm:$0xf] %v1054
    %1064 = vst [vmem:[#allocation3 + $0x80] sm:$0xf] %v1055
    %1065 = vst [vmem:[#allocation3 + $0x88] sm:$0xf] %v1056
    %1066 = vst [vmem:[#allocation3 + $0x90] sm:$0xf] %v1057
    %1067 = vst.msk [vmem:[#allocation3 + $0x98] sm:$0xf] %vm50, %v1053
    %v1068 = vld [vmem:[#allocation2] sm:$0xff]
    %v1069 = vld [vmem:[#allocation2 + $0x8] sm:$0xff]
    %v1070 = vld [vmem:[#allocation2 + $0x10] sm:$0xf]
    %v1074 = vcombine.low %v1068, %v1068
    %v1075 = vcombine.low %v1069, %v1069
    %v1076 = vcombine.low %v1070, %v1070
    %1077 = vrot.lane.b32.xlu0 %v1074, 95
    %v1078 = vpop.permute.xlu0 %1077
    %1079 = vrot.lane.b32.xlu0 %v1068, 95
    %v1080 = vpop.permute.xlu0 %1079
    %1081 = vrot.lane.b32.xlu0 %v1075, 95
    %v1082 = vpop.permute.xlu0 %1081
    %1083 = vrot.lane.b32.xlu0 %v1069, 95
    %v1084 = vpop.permute.xlu0 %1083
    %1085 = vrot.lane.b32.xlu0 %v1076, 95
    %v1086 = vpop.permute.xlu0 %1085
    %v1087 = vsel %vm454, %v1078, %v1080
    %v1088 = vsel %vm454, %v1080, %v1082
    %v1089 = vsel %vm454, %v1082, %v1084
    %v1090 = vsel %vm454, %v1084, %v1086
    %1096 = vst [vmem:[#allocation3 + $0x78] sm:$0xf0] %v1087
    %1097 = vst [vmem:[#allocation3 + $0x80] sm:$0xf0] %v1088
    %1098 = vst [vmem:[#allocation3 + $0x88] sm:$0xf0] %v1089
    %1099 = vst [vmem:[#allocation3 + $0x90] sm:$0xf0] %v1090
    %1100 = vst.msk [vmem:[#allocation3 + $0x98] sm:$0xf0] %vm166, %v1086
    %v1101 = vld [vmem:[#allocation2] sm:$0xff]
    %v1102 = vld [vmem:[#allocation2 + $0x8] sm:$0xff]
    %v1103 = vld [vmem:[#allocation2 + $0x10] sm:$0xf]
    %v1104 = vmul.f32 %v1101, %v480
    %v1105 = vmul.f32 %v1102, %v482
    %v1106 = vmul.f32 %v1103, %v483
    %v1110 = vcombine.high %v1104, %v1104
    %v1111 = vcombine.high %v1105, %v1105
    %1112 = vrot.lane.b32.xlu0 %v1104, 94
    %v1113 = vpop.permute.xlu0 %1112
    %1114 = vrot.lane.b32.xlu0 %v1110, 94
    %v1115 = vpop.permute.xlu0 %1114
    %1116 = vrot.lane.b32.xlu0 %v1105, 94
    %v1117 = vpop.permute.xlu0 %1116
    %1118 = vrot.lane.b32.xlu0 %v1111, 94
    %v1119 = vpop.permute.xlu0 %1118
    %1120 = vrot.lane.b32.xlu0 %v1106, 94
    %v1121 = vpop.permute.xlu0 %1120
    %v1122 = vsel %vm505, %v1113, %v1115
    %v1123 = vsel %vm505, %v1115, %v1117
    %v1124 = vsel %vm505, %v1117, %v1119
    %v1125 = vsel %vm505, %v1119, %v1121
    %1131 = vst [vmem:[#allocation3 + $0xa0] sm:$0xf] %v1122
    %1132 = vst [vmem:[#allocation3 + $0xa8] sm:$0xf] %v1123
    %1133 = vst [vmem:[#allocation3 + $0xb0] sm:$0xf] %v1124
    %1134 = vst [vmem:[#allocation3 + $0xb8] sm:$0xf] %v1125
    %1135 = vst.msk [vmem:[#allocation3 + $0xc0] sm:$0xf] %vm50, %v1121
    %v1136 = vld [vmem:[%s3] sm:$0xf]
    %v1137 = vld [vmem:[#allocation3] sm:$0xff]
    %v1138 = vld [vmem:[#allocation3 + $0x8] sm:$0xff]
    %v1139 = vld [vmem:[#allocation3 + $0x10] sm:$0xff]
    %v1140 = vld [vmem:[#allocation3 + $0x18] sm:$0xff]
    %v1141 = vld [vmem:[#allocation3 + $0x20] sm:$0xff]
    %v1142 = vld [vmem:[#allocation3 + $0x28] sm:$0xff]
    %v1143 = vld [vmem:[#allocation3 + $0x30] sm:$0xff]
    %v1144 = vld [vmem:[#allocation3 + $0x38] sm:$0xff]
    %v1145 = vld [vmem:[#allocation3 + $0x40] sm:$0xff]
    %v1146 = vld [vmem:[#allocation3 + $0x48] sm:$0xff]
    %v1147 = vld [vmem:[#allocation3 + $0x50] sm:$0xff]
    %v1148 = vld [vmem:[#allocation3 + $0x58] sm:$0xff]
    %v1149 = vld [vmem:[#allocation3 + $0x60] sm:$0xff]
    %v1150 = vld [vmem:[#allocation3 + $0x68] sm:$0xff]
    %v1151 = vld [vmem:[#allocation3 + $0x70] sm:$0xff]
    %v1152 = vld [vmem:[#allocation3 + $0x78] sm:$0xff]
    %v1153 = vld [vmem:[#allocation3 + $0x80] sm:$0xff]
    %v1154 = vld [vmem:[#allocation3 + $0x88] sm:$0xff]
    %v1155 = vld [vmem:[#allocation3 + $0x90] sm:$0xff]
    %v1156 = vld [vmem:[#allocation3 + $0x98] sm:$0xff]
    %v1157 = vld [vmem:[#allocation3 + $0xa0] sm:$0xf]
    %v1158 = vld [vmem:[#allocation3 + $0xa8] sm:$0xf]
    %v1159 = vld [vmem:[#allocation3 + $0xb0] sm:$0xf]
    %v1160 = vld [vmem:[#allocation3 + $0xb8] sm:$0xf]
    %v1161 = vld [vmem:[#allocation3 + $0xc0] sm:$0xf]
    %v1162 = vld [vmem:[%s4] sm:$0xf]
    %1164 = vset.pattern.permute.xlu0 0
    %1165 = vperm.xlu0 %1164, %v1162
    %v1166 = vpop.permute.xlu0 %1165
    %v1169 = vsel %vm552, %v1136, 0
    %v1172 = vsel %vm204, %v1157, 0
    %v1175 = vsel %vm204, %v1158, 0
    %v1178 = vsel %vm204, %v1159, 0
    %v1181 = vsel %vm204, %v1160, 0
    %v1184 = vsel %vm204, %v1161, 0
    %1186 = vmatprep.subr.mxu0 0.0
    %1187 = vmatpush1.msra.mxu0 0.0
    %1188 = vmatprep.subr.mxu0 0.0
    %1189 = vmatpush1.msra.mxu0 0.0
    %1190 = vmatprep.subr.mxu0 0.0
    %1191 = vmatpush1.msra.mxu0 0.0
    %1192 = vmatprep.subr.mxu0 0.0
    %1193 = vmatpush1.msra.mxu0 0.0
    %1194 = vmatprep.subr.mxu0 0.0
    %1195 = vmatpush1.msra.mxu0 0.0
    %1196 = vmatprep.subr.mxu0 0.0
    %1197 = vmatpush1.msra.mxu0 0.0
    %1198 = vmatprep.subr.mxu0 0.0
    %1199 = vmatpush1.msra.mxu0 0.0
    %1200 = vmatprep.subr.mxu0 0.0
    %1201 = vmatpush1.msra.mxu0 0.0
    %1202 = vmatprep.subr.mxu0 0.0
    %1203 = vmatpush1.msra.mxu0 0.0
    %1204 = vmatprep.subr.mxu0 0.0
    %1205 = vmatpush1.msra.mxu0 0.0
    %1206 = vmatprep.subr.mxu0 0.0
    %1207 = vmatpush1.msra.mxu0 0.0
    %1208 = vmatprep.subr.mxu0 %v1175
    %1209 = vmatpush1.msra.mxu0 %v1172
    %1210 = vmatprep.subr.mxu0 %v1153
    %1211 = vmatpush1.msra.mxu0 %v1152
    %1212 = vmatprep.subr.mxu0 %v1148
    %1213 = vmatpush1.msra.mxu0 %v1147
    %1214 = vmatprep.subr.mxu0 %v1143
    %1215 = vmatpush1.msra.mxu0 %v1142
    %1216 = vmatprep.subr.mxu0 %v1138
    %1217 = vmatpush1.msra.mxu0 %v1137
    %1218 = vmatprep.subr.mxu0 0.0
    %1219 = vmatpush2.msra.mxu0 0.0
    %1220 = vmatprep.subr.mxu0 0.0
    %1221 = vmatpush2.msra.mxu0 0.0
    %1222 = vmatprep.subr.mxu0 0.0
    %1223 = vmatpush2.msra.mxu0 0.0
    %1224 = vmatprep.subr.mxu0 0.0
    %1225 = vmatpush2.msra.mxu0 0.0
    %1226 = vmatprep.subr.mxu0 0.0
    %1227 = vmatpush2.msra.mxu0 0.0
    %1228 = vmatprep.subr.mxu0 0.0
    %1229 = vmatpush2.msra.mxu0 0.0
    %1230 = vmatprep.subr.mxu0 0.0
    %1231 = vmatpush2.msra.mxu0 0.0
    %1232 = vmatprep.subr.mxu0 0.0
    %1233 = vmatpush2.msra.mxu0 0.0
    %1234 = vmatprep.subr.mxu0 0.0
    %1235 = vmatpush2.msra.mxu0 0.0
    %1236 = vmatprep.subr.mxu0 0.0
    %1237 = vmatpush2.msra.mxu0 0.0
    %1238 = vmatprep.subr.mxu0 0.0
    %1239 = vmatpush2.msra.mxu0 0.0
    %1240 = vmatprep.subr.mxu0 0.0
    %1241 = vmatpush2.msra.mxu0 0.0
    %1242 = vmatprep.subr.mxu0 0.0
    %1243 = vmatpush2.msra.mxu0 0.0
    %1244 = vmatprep.subr.mxu0 0.0
    %1245 = vmatpush2.msra.mxu0 0.0
    %1246 = vmatprep.subr.mxu0 0.0
    %1247 = vmatpush2.msra.mxu0 0.0
    %1248 = vmatprep.subr.mxu0 0.0
    %1249 = vmatpush2.msra.mxu0 0.0
    %1250 = vmatprep.mubr.f32.mxu0 0.0
    %1251 = vmatmul.mubr.f32.gmra.mxu0 %v1169
    %v1252 = vpop.f32.mrf.mxu0
    %v1253 = vadd.f32 %v1166, %v1252
    %v1254 = vpop.f32.mrf.mxu0
    %v1255 = vadd.f32 %v1166, %v1254
    %1256 = vdwg.mxu0
    %1257 = vmatprep.subr.mxu0 0.0
    %1258 = vmatpush1.msra.mxu0 0.0
    %1259 = vmatprep.subr.mxu0 0.0
    %1260 = vmatpush1.msra.mxu0 0.0
    %1261 = vmatprep.subr.mxu0 0.0
    %1262 = vmatpush1.msra.mxu0 0.0
    %1263 = vmatprep.subr.mxu0 0.0
    %1264 = vmatpush1.msra.mxu0 0.0
    %1265 = vmatprep.subr.mxu0 0.0
    %1266 = vmatpush1.msra.mxu0 0.0
    %1267 = vmatprep.subr.mxu0 0.0
    %1268 = vmatpush1.msra.mxu0 0.0
    %1269 = vmatprep.subr.mxu0 0.0
    %1270 = vmatpush1.msra.mxu0 0.0
    %1271 = vmatprep.subr.mxu0 0.0
    %1272 = vmatpush1.msra.mxu0 0.0
    %1273 = vmatprep.subr.mxu0 0.0
    %1274 = vmatpush1.msra.mxu0 0.0
    %1275 = vmatprep.subr.mxu0 0.0
    %1276 = vmatpush1.msra.mxu0 0.0
    %1277 = vmatprep.subr.mxu0 0.0
    %1278 = vmatpush1.msra.mxu0 0.0
    %1279 = vmatprep.subr.mxu0 %v1181
    %1280 = vmatpush1.msra.mxu0 %v1178
    %1281 = vmatprep.subr.mxu0 %v1155
    %1282 = vmatpush1.msra.mxu0 %v1154
    %1283 = vmatprep.subr.mxu0 %v1150
    %1284 = vmatpush1.msra.mxu0 %v1149
    %1285 = vmatprep.subr.mxu0 %v1145
    %1286 = vmatpush1.msra.mxu0 %v1144
    %1287 = vmatprep.subr.mxu0 %v1140
    %1288 = vmatpush1.msra.mxu0 %v1139
    %1289 = vmatprep.subr.mxu0 0.0
    %1290 = vmatpush2.msra.mxu0 0.0
    %1291 = vmatprep.subr.mxu0 0.0
    %1292 = vmatpush2.msra.mxu0 0.0
    %1293 = vmatprep.subr.mxu0 0.0
    %1294 = vmatpush2.msra.mxu0 0.0
    %1295 = vmatprep.subr.mxu0 0.0
    %1296 = vmatpush2.msra.mxu0 0.0
    %1297 = vmatprep.subr.mxu0 0.0
    %1298 = vmatpush2.msra.mxu0 0.0
    %1299 = vmatprep.subr.mxu0 0.0
    %1300 = vmatpush2.msra.mxu0 0.0
    %1301 = vmatprep.subr.mxu0 0.0
    %1302 = vmatpush2.msra.mxu0 0.0
    %1303 = vmatprep.subr.mxu0 0.0
    %1304 = vmatpush2.msra.mxu0 0.0
    %1305 = vmatprep.subr.mxu0 0.0
    %1306 = vmatpush2.msra.mxu0 0.0
    %1307 = vmatprep.subr.mxu0 0.0
    %1308 = vmatpush2.msra.mxu0 0.0
    %1309 = vmatprep.subr.mxu0 0.0
    %1310 = vmatpush2.msra.mxu0 0.0
    %1311 = vmatprep.subr.mxu0 0.0
    %1312 = vmatpush2.msra.mxu0 0.0
    %1313 = vmatprep.subr.mxu0 0.0
    %1314 = vmatpush2.msra.mxu0 0.0
    %1315 = vmatprep.subr.mxu0 0.0
    %1316 = vmatpush2.msra.mxu0 0.0
    %1317 = vmatprep.subr.mxu0 0.0
    %1318 = vmatpush2.msra.mxu0 0.0
    %1319 = vmatprep.subr.mxu0 0.0
    %1320 = vmatpush2.msra.mxu0 0.0
    %1321 = vmatprep.mubr.f32.mxu0 0.0
    %1322 = vmatmul.mubr.f32.gmra.mxu0 %v1169
    %v1323 = vpop.f32.mrf.mxu0
    %v1324 = vadd.f32 %v1166, %v1323
    %v1325 = vpop.f32.mrf.mxu0
    %v1326 = vadd.f32 %v1166, %v1325
    %1327 = vdwg.mxu0
    %1328 = vmatprep.subr.mxu0 0.0
    %1329 = vmatpush1.msra.mxu0 0.0
    %1330 = vmatprep.subr.mxu0 0.0
    %1331 = vmatpush1.msra.mxu0 0.0
    %1332 = vmatprep.subr.mxu0 0.0
    %1333 = vmatpush1.msra.mxu0 0.0
    %1334 = vmatprep.subr.mxu0 0.0
    %1335 = vmatpush1.msra.mxu0 0.0
    %1336 = vmatprep.subr.mxu0 0.0
    %1337 = vmatpush1.msra.mxu0 0.0
    %1338 = vmatprep.subr.mxu0 0.0
    %1339 = vmatpush1.msra.mxu0 0.0
    %1340 = vmatprep.subr.mxu0 0.0
    %1341 = vmatpush1.msra.mxu0 0.0
    %1342 = vmatprep.subr.mxu0 0.0
    %1343 = vmatpush1.msra.mxu0 0.0
    %1344 = vmatprep.subr.mxu0 0.0
    %1345 = vmatpush1.msra.mxu0 0.0
    %1346 = vmatprep.subr.mxu0 0.0
    %1347 = vmatpush1.msra.mxu0 0.0
    %1348 = vmatprep.subr.mxu0 0.0
    %1349 = vmatpush1.msra.mxu0 0.0
    %1350 = vmatprep.subr.mxu0 0.0
    %1351 = vmatpush1.msra.mxu0 %v1184
    %1352 = vmatprep.subr.mxu0 0.0
    %1353 = vmatpush1.msra.mxu0 %v1156
    %1354 = vmatprep.subr.mxu0 0.0
    %1355 = vmatpush1.msra.mxu0 %v1151
    %1356 = vmatprep.subr.mxu0 0.0
    %1357 = vmatpush1.msra.mxu0 %v1146
    %1358 = vmatprep.subr.mxu0 0.0
    %1359 = vmatpush1.msra.mxu0 %v1141
    %1360 = vmatprep.subr.mxu0 0.0
    %1361 = vmatpush2.msra.mxu0 0.0
    %1362 = vmatprep.subr.mxu0 0.0
    %1363 = vmatpush2.msra.mxu0 0.0
    %1364 = vmatprep.subr.mxu0 0.0
    %1365 = vmatpush2.msra.mxu0 0.0
    %1366 = vmatprep.subr.mxu0 0.0
    %1367 = vmatpush2.msra.mxu0 0.0
    %1368 = vmatprep.subr.mxu0 0.0
    %1369 = vmatpush2.msra.mxu0 0.0
    %1370 = vmatprep.subr.mxu0 0.0
    %1371 = vmatpush2.msra.mxu0 0.0
    %1372 = vmatprep.subr.mxu0 0.0
    %1373 = vmatpush2.msra.mxu0 0.0
    %1374 = vmatprep.subr.mxu0 0.0
    %1375 = vmatpush2.msra.mxu0 0.0
    %1376 = vmatprep.subr.mxu0 0.0
    %1377 = vmatpush2.msra.mxu0 0.0
    %1378 = vmatprep.subr.mxu0 0.0
    %1379 = vmatpush2.msra.mxu0 0.0
    %1380 = vmatprep.subr.mxu0 0.0
    %1381 = vmatpush2.msra.mxu0 0.0
    %1382 = vmatprep.subr.mxu0 0.0
    %1383 = vmatpush2.msra.mxu0 0.0
    %1384 = vmatprep.subr.mxu0 0.0
    %1385 = vmatpush2.msra.mxu0 0.0
    %1386 = vmatprep.subr.mxu0 0.0
    %1387 = vmatpush2.msra.mxu0 0.0
    %1388 = vmatprep.subr.mxu0 0.0
    %1389 = vmatpush2.msra.mxu0 0.0
    %1390 = vmatprep.subr.mxu0 0.0
    %1391 = vmatpush2.msra.mxu0 0.0
    %1392 = vmatprep.mubr.f32.mxu0 0.0
    %1393 = vmatmul.mubr.f32.gmra.mxu0 %v1169
    %v1394 = vpop.f32.mrf.mxu0
    %v1395 = vadd.f32 %v1166, %v1394
    %v1396 = vpop.f32.mrf.mxu0
    %1397 = vdwg.mxu0
    %v1398 = vld [vmem:[#allocation4] sm:$0xff]
    %v1401 = vcombine.low %v1253, %v1255
    %v1403 = vadd.f32 %v1398, %v1401
    %1404 = vst [vmem:[#allocation9] sm:$0xff] %v1403
    %v1405 = vld [vmem:[%s75] sm:$0xff]
    %v1409 = vcombine.low %v1324, %v1326
    %1410 = vrot.lane.b32.xlu0 %v1409, 111
    %v1411 = vpop.permute.xlu0 %1410
    %1412 = vrot.lane.b32.xlu0 %v1395, 111
    %v1413 = vpop.permute.xlu0 %1412
    %v1414 = vrot.slane %v1411, 4
    %v1415 = vrot.slane %v1413, 4
    %v1416 = vsel %vm204, %v1414, %v1415
    %v1417 = vsel %vm315, %v1411, %v1416
    %v1419 = vadd.f32 %v1405, %v1417
    %s1420 = scalar_lea.vmem [#allocation9], 8
    %1421 = vst [vmem:[%s1420] sm:$0xff] %v1419
    // Predicated region
    $region34: #{tpu_custom_call.1} parent=1 // pred_check
      _
    $region35: #{tpu_custom_call.1} parent=1 // pred_check_branch
      %1423 = sbr.rel (0) target = $region37
    $region36: #{tpu_custom_call.1} parent=1 // pred_region
      %s1425 = ssub.s32 256, 256
      %1426 = vsyncadd [#allocation6], %s1425
      %s1427 = sshll.u32 [#allocation9], 4
      %s1428 = int_to_ptr.vmem [resolvable:$true] %s1427
      %1433 = dma.vmem_to_hbm [thread:$0]  %s1428, 256, %s6, [#allocation6], 128, 128, 8
    $region37: #{tpu_custom_call.1} parent=1 // pred_fallthru
      _
    // Predicated region
    $region38: #{tpu_custom_call.1} parent=1 // pred_check
      _
    $region39: #{tpu_custom_call.1} parent=1 // pred_check_branch
      %1435 = sbr.rel (0) target = $region41
    $region40: #{tpu_custom_call.1} parent=1 // pred_region
      %1436 = dma.done [#allocation6], 256
    $region41: #{tpu_custom_call.1} parent=1 // pred_fallthru
      _
    %1437 = vsyncpa [#allocation5], 1
    %1438 = vsyncpa [#allocation8], 1
    %1439 = vsyncpa [#allocation6], 1

</llo_original>
